<compile_context>
chip_gen: v7x
topology: tpu7x:2x2x1
jax: 0.10.0
libtpu: 0.0.40
codegen_flags: <defaults>
</compile_context>

<pallas_src>
import functools

import jax
import jax.numpy as jnp
from jax import lax
from jax.experimental import pallas as pl
from jax.experimental.pallas import tpu as pltpu

LN_EPS = 1e-5  # nn.LayerNorm default


# --------------------------------------------------------------------------------------
# Kernel 1: LayerNorm + QK projection + per-head softmax(Q K^T)
# --------------------------------------------------------------------------------------
def _prologue_kernel(x_ref, g_ref, bta_ref, wq_ref, wk_ref, xn_ref, attn_ref,
                     *, heads, dim_head, scale):
    x = x_ref[0].astype(jnp.float32)                         # (N, D)

    # LayerNorm over D (f32 statistics)
    mean = jnp.mean(x, axis=-1, keepdims=True)
    xc = x - mean
    var = jnp.mean(xc * xc, axis=-1, keepdims=True)
    xn = xc * lax.rsqrt(var + LN_EPS)
    xn = xn * g_ref[...].astype(jnp.float32) + bta_ref[...].astype(jnp.float32)
    xn_ref[0] = xn.astype(xn_ref.dtype)

    # QK projection (no bias); weights fed to the MXU in native dtype, f32 accumulation.
    q = jnp.dot(xn, wq_ref[...], preferred_element_type=jnp.float32)   # (N, I)
    k = jnp.dot(xn, wk_ref[...], preferred_element_type=jnp.float32)   # (N, I)

    # Per-head scaled dot-product + softmax (heads is small & static -> unrolled).
    for h in range(heads):
        lo = h * dim_head
        hi = lo + dim_head
        qh = q[:, lo:hi]
        kh = k[:, lo:hi]
        dots = lax.dot_general(qh, kh, (((1,), (1,)), ((), ())),
                               preferred_element_type=jnp.float32) * scale   # (N, N)
        dots = dots - jnp.max(dots, axis=-1, keepdims=True)
        p = jnp.exp(dots)
        attn_ref[0, h] = (p / jnp.sum(p, axis=-1, keepdims=True)).astype(attn_ref.dtype)


# --------------------------------------------------------------------------------------
# Kernel 2: relative-position value projection + attention-weighted sum + output proj
# --------------------------------------------------------------------------------------
def _translution_kernel(idx_ref,                      # scalar-prefetch: (N, N) int32
                        xn_ref, attn_ref, wv_ref, e_ref, wo_ref, bo_ref,   # inputs
                        y_ref,                        # output
                        acc_ref):                     # scratch (B, I) f32
    m = pl.program_id(1)
    last = pl.num_programs(1) - 1

    @pl.when(m == 0)
    def _():
        acc_ref[...] = jnp.zeros_like(acc_ref)

    xm = xn_ref[0]                                                    # (B, D)  = xn[:, m, :]
    wv = wv_ref[0]                                                    # (D, I)  = params[idx[n, m]]
    vm = jnp.dot(xm, wv, preferred_element_type=jnp.float32)          # (B, I)

    a = attn_ref[0, 0].astype(jnp.float32)                            # (B, H) = attn[:, :, n, m]
    ae = jnp.dot(a, e_ref[...], preferred_element_type=jnp.float32)   # (B, I) head-expanded

    acc_ref[...] += ae * vm

    @pl.when(m == last)
    def _():
        y = jnp.dot(acc_ref[...], wo_ref[...], preferred_element_type=jnp.float32)
        y = y + bo_ref[...].astype(jnp.float32)
        y_ref[0] = y.astype(y_ref.dtype)


# --------------------------------------------------------------------------------------
# Host-side helpers / wrapper
# --------------------------------------------------------------------------------------
def build_rel_index_map(height, width):
    """Exactly mirrors SharedParameterRelCls.index_map construction. Shape (N, N)."""
    num_img_weights = (2 * height - 1) * (2 * width - 1)
    idx_cls = num_img_weights
    idx_cls_in = num_img_weights + 1
    idx_cls_out = num_img_weights + 2
    index_map = [[idx_cls] + [idx_cls_in] * (height * width)]
    for x in range(height):
        for y in range(width):
            row = [idx_cls_out]
            for i in range(height):
                for j in range(width):
                    dx = x - i + height - 1
                    dy = y - j + width - 1
                    row.append(dx * (2 * width - 1) + dy)
            index_map.append(row)
    return jnp.array(index_map, dtype=jnp.int32)


def attention_pallas(x, gamma, beta, wq, wk, unique_params, index_map, wo, bo,
                     *, heads, dim_head):
    """x: (B, N, D) -> (B, N, D). project_out assumed (pass wo=I, bo=0 otherwise)."""
    B, N, D = x.shape
    inner = heads * dim_head
    scale = dim_head ** -0.5

    # -------- kernel 1: LayerNorm + QK + softmax --------
    xn, attn = pl.pallas_call(
        functools.partial(_prologue_kernel, heads=heads, dim_head=dim_head, scale=scale),
        out_shape=(jax.ShapeDtypeStruct((B, N, D), jnp.float32),
                   jax.ShapeDtypeStruct((B, heads, N, N), jnp.float32)),
        grid_spec=pltpu.PrefetchScalarGridSpec(
            num_scalar_prefetch=0,
            grid=(B,),
            in_specs=[
                pl.BlockSpec((1, N, D), lambda b: (b, 0, 0)),     # x
                pl.BlockSpec((1, D), lambda b: (0, 0)),           # gamma
                pl.BlockSpec((1, D), lambda b: (0, 0)),           # beta
                pl.BlockSpec((D, inner), lambda b: (0, 0)),       # Wq
                pl.BlockSpec((D, inner), lambda b: (0, 0)),       # Wk
            ],
            out_specs=[
                pl.BlockSpec((1, N, D), lambda b: (b, 0, 0)),             # xn
                pl.BlockSpec((1, heads, N, N), lambda b: (b, 0, 0, 0)),   # attn
            ],
        ),
        compiler_params=pltpu.CompilerParams(
            dimension_semantics=("parallel",),
            vmem_limit_bytes=32 * 1024 * 1024),
    )(x, gamma.reshape(1, D), beta.reshape(1, D), wq, wk)

    # Layout plumbing for kernel 2 (lane-dense blocks, no in-kernel dynamic indexing).
    xn_t = jnp.transpose(xn, (1, 0, 2))            # (N, B, D)
    attn_t = jnp.transpose(attn, (2, 3, 0, 1))     # (Nq, Nk, B, H)

    # Head -> channel expansion matrix: E[h, h*dh + d] = 1 (head-major like '(h d)').
    e_mat = (jnp.arange(inner, dtype=jnp.int32)[None, :] // dim_head
             == jnp.arange(heads, dtype=jnp.int32)[:, None]).astype(jnp.float32)  # (H, I)

    # Advisory cost hint for the XLA scheduler.
    flops = 2 * N * N * B * D * inner + 2 * N * B * inner * D
    bytes_accessed = 4 * (N * N * D * inner + N * N * B * D + N * N * B * heads
                          + N * B * D + inner * D)

    # -------- kernel 2: gathered value projection + weighted sum + out projection --------
    y_t = pl.pallas_call(
        _translution_kernel,
        out_shape=jax.ShapeDtypeStruct((N, B, D), x.dtype),
        grid_spec=pltpu.PrefetchScalarGridSpec(
            num_scalar_prefetch=1,                      # index_map -> SMEM
            grid=(N, N),                                # (query n, key m); m = reduction
            in_specs=[
                pl.BlockSpec((1, B, D), lambda n, m, idx: (m, 0, 0)),            # xn_t
                pl.BlockSpec((1, 1, B, heads), lambda n, m, idx: (n, m, 0, 0)),  # attn_t
                pl.BlockSpec((1, D, inner), lambda n, m, idx: (idx[n, m], 0, 0)),  # W_v gather
                pl.BlockSpec((heads, inner), lambda n, m, idx: (0, 0)),          # E
                pl.BlockSpec((inner, D), lambda n, m, idx: (0, 0)),              # Wo
                pl.BlockSpec((1, D), lambda n, m, idx: (0, 0)),                  # bo
            ],
            out_specs=pl.BlockSpec((1, B, D), lambda n, m, idx: (n, 0, 0)),
            scratch_shapes=[pltpu.VMEM((B, inner), jnp.float32)],
        ),
        compiler_params=pltpu.CompilerParams(
            dimension_semantics=("parallel", "arbitrary"),
            vmem_limit_bytes=32 * 1024 * 1024),
        cost_estimate=pl.CostEstimate(flops=flops, transcendentals=0,
                                      bytes_accessed=bytes_accessed),
    )(index_map, xn_t, attn_t, unique_params, e_mat, wo, bo.reshape(1, D))

    return jnp.transpose(y_t, (1, 0, 2))            # (B, N, D)


# --------------------------------------------------------------------------------------
# Pure-JAX reference (mirrors the PyTorch forward exactly)
# --------------------------------------------------------------------------------------
def _reference(x, gamma, beta, wq, wk, unique_params, index_map, wo, bo, *, heads, dim_head):
    B, N, D = x.shape
    inner = heads * dim_head
    scale = dim_head ** -0.5
    hp = lax.Precision.HIGHEST

    xf = x.astype(jnp.float32)
    mean = jnp.mean(xf, axis=-1, keepdims=True)
    var = jnp.mean((xf - mean) ** 2, axis=-1, keepdims=True)
    xn = (xf - mean) * lax.rsqrt(var + LN_EPS) * gamma + beta

    q = jnp.einsum("bnd,di->bni", xn, wq, precision=hp)
    k = jnp.einsum("bnd,di->bni", xn, wk, precision=hp)
    q = q.reshape(B, N, heads, dim_head).transpose(0, 2, 1, 3)
    k = k.reshape(B, N, heads, dim_head).transpose(0, 2, 1, 3)
    dots = jnp.einsum("bhnd,bhmd->bhnm", q, k, precision=hp) * scale
    attn = jax.nn.softmax(dots, axis=-1)

    w = unique_params[index_map]                                        # (N, N, D, I)
    v = jnp.einsum("bmd,nmdi->bnmi", xn, w, precision=hp)               # (B, N, N, I)
    v = v.reshape(B, N, N, heads, dim_head).transpose(0, 3, 1, 2, 4)    # (B, H, N, N, dh)
    out = jnp.sum(attn[..., None] * v, axis=3)                          # (B, H, N, dh)
    out = out.transpose(0, 2, 1, 3).reshape(B, N, inner)
    y = jnp.einsum("bni,id->bnd", out, wo, precision=hp) + bo
    return y.astype(x.dtype)


if __name__ == "__main__":
    key = jax.random.PRNGKey(0)

    # Small but lane-dense config: 4x4 patches + cls token, dim=128, 2 heads x 64.
    height, width = 4, 4
    heads, dim_head = 2, 64
    dim = 128
    B = 2
    N = height * width + 1                                   # 17 tokens
    inner = heads * dim_head                                  # 128
    num_w = (2 * height - 1) * (2 * width - 1) + 3            # 52 unique value weights

    ks = jax.random.split(key, 8)
    x = jax.random.normal(ks[0], (B, N, dim), dtype=jnp.float32)
    gamma = jnp.ones((dim,), jnp.float32) + 0.02 * jax.random.normal(ks[1], (dim,))
    beta = 0.02 * jax.random.normal(ks[2], (dim,))

    lim = 1.0 / (dim ** 0.5)
    wq = jax.random.uniform(ks[3], (dim, inner), jnp.float32, -lim, lim)
    wk = jax.random.uniform(ks[4], (dim, inner), jnp.float32, -lim, lim)
    unique_params = jax.random.uniform(ks[5], (num_w, dim, inner), jnp.float32, -lim, lim)
    lim_o = 1.0 / (inner ** 0.5)
    wo = jax.random.uniform(ks[6], (inner, dim), jnp.float32, -lim_o, lim_o)
    bo = jax.random.uniform(ks[7], (dim,), jnp.float32, -lim_o, lim_o)

    index_map = build_rel_index_map(height, width)

    fn = jax.jit(functools.partial(attention_pallas, heads=heads, dim_head=dim_head))
    out = fn(x, gamma, beta, wq, wk, unique_params, index_map, wo, bo)
    out = jax.block_until_ready(out)

    ref = _reference(x, gamma, beta, wq, wk, unique_params, index_map, wo, bo,
                     heads=heads, dim_head=dim_head)
    assert out.shape == (B, N, dim)
    err = float(jnp.max(jnp.abs(out - ref)))
    assert jnp.allclose(out, ref, atol=3e-3, rtol=3e-3), f"max abs err {err}"
    print("KERNEL_OK")
</pallas_src>

<mosaic_0001>
module attributes {stable_mosaic.version = 11 : i64} {
  func.func @_prologue_kernel(%arg0: i32, %arg1: memref<1x17x128xf32, #tpu.memory_space<vmem>>, %arg2: memref<1x128xf32, #tpu.memory_space<vmem>>, %arg3: memref<1x128xf32, #tpu.memory_space<vmem>>, %arg4: memref<128x128xf32, #tpu.memory_space<vmem>>, %arg5: memref<128x128xf32, #tpu.memory_space<vmem>>, %arg6: memref<1x17x128xf32, #tpu.memory_space<vmem>>, %arg7: memref<1x2x17x17xf32, #tpu.memory_space<vmem>>) attributes {dimension_semantics = [#tpu.dimension_semantics<parallel>], iteration_bounds = array<i64: 2>, scalar_prefetch = 0 : i64, scratch_operands = 0 : i64, tpu.core_type = #tpu.core_type<tc>, window_params = [{transform_indices = @transform_0, window_bounds = array<i64: 1, 17, 128>}, {pipeline_mode = #tpu.pipeline_mode<synchronous>, transform_indices = @transform_1, window_bounds = array<i64: 1, 128>}, {pipeline_mode = #tpu.pipeline_mode<synchronous>, transform_indices = @transform_2, window_bounds = array<i64: 1, 128>}, {pipeline_mode = #tpu.pipeline_mode<synchronous>, transform_indices = @transform_3, window_bounds = array<i64: 128, 128>}, {pipeline_mode = #tpu.pipeline_mode<synchronous>, transform_indices = @transform_4, window_bounds = array<i64: 128, 128>}, {transform_indices = @transform_5, window_bounds = array<i64: 1, 17, 128>}, {transform_indices = @transform_6, window_bounds = array<i64: 1, 2, 17, 17>}]} {
    %c0 = arith.constant 0 : index
    %c0_0 = arith.constant 0 : index
    %c0_1 = arith.constant 0 : index
    %0 = vector.load %arg1[%c0, %c0_0, %c0_1] : memref<1x17x128xf32, #tpu.memory_space<vmem>>, vector<1x17x128xf32>
    %1 = vector.shape_cast %0 : vector<1x17x128xf32> to vector<17x128xf32>
    %cst = arith.constant dense<0.000000e+00> : vector<17xf32>
    %2 = vector.multi_reduction <add>, %1, %cst [1] : vector<17x128xf32> to vector<17xf32>
    %3 = vector.shape_cast %2 : vector<17xf32> to vector<17x1xf32>
    %cst_2 = arith.constant 1.280000e+02 : f32
    %4 = vector.broadcast %cst_2 : f32 to vector<17x1xf32>
    %5 = arith.divf %3, %4 : vector<17x1xf32>
    %6 = vector.broadcast %5 : vector<17x1xf32> to vector<17x128xf32>
    %7 = arith.subf %1, %6 : vector<17x128xf32>
    %8 = arith.mulf %7, %7 : vector<17x128xf32>
    %cst_3 = arith.constant dense<0.000000e+00> : vector<17xf32>
    %9 = vector.multi_reduction <add>, %8, %cst_3 [1] : vector<17x128xf32> to vector<17xf32>
    %10 = vector.shape_cast %9 : vector<17xf32> to vector<17x1xf32>
    %cst_4 = arith.constant 1.280000e+02 : f32
    %11 = vector.broadcast %cst_4 : f32 to vector<17x1xf32>
    %12 = arith.divf %10, %11 : vector<17x1xf32>
    %cst_5 = arith.constant 9.99999974E-6 : f32
    %13 = vector.broadcast %cst_5 : f32 to vector<17x1xf32>
    %14 = arith.addf %12, %13 : vector<17x1xf32>
    %15 = math.rsqrt %14 : vector<17x1xf32>
    %16 = vector.broadcast %15 : vector<17x1xf32> to vector<17x128xf32>
    %17 = arith.mulf %7, %16 : vector<17x128xf32>
    %c0_6 = arith.constant 0 : index
    %c0_7 = arith.constant 0 : index
    %18 = vector.load %arg2[%c0_6, %c0_7] : memref<1x128xf32, #tpu.memory_space<vmem>>, vector<1x128xf32>
    %19 = vector.broadcast %18 : vector<1x128xf32> to vector<17x128xf32>
    %20 = arith.mulf %17, %19 : vector<17x128xf32>
    %c0_8 = arith.constant 0 : index
    %c0_9 = arith.constant 0 : index
    %21 = vector.load %arg3[%c0_8, %c0_9] : memref<1x128xf32, #tpu.memory_space<vmem>>, vector<1x128xf32>
    %22 = vector.broadcast %21 : vector<1x128xf32> to vector<17x128xf32>
    %23 = arith.addf %20, %22 : vector<17x128xf32>
    %c0_10 = arith.constant 0 : index
    %c0_11 = arith.constant 0 : index
    %c0_12 = arith.constant 0 : index
    %24 = vector.load %arg6[%c0_10, %c0_11, %c0_12] : memref<1x17x128xf32, #tpu.memory_space<vmem>>, vector<1x17x128xf32>
    %25 = vector.shape_cast %24 : vector<1x17x128xf32> to vector<17x128xf32>
    %26 = vector.shape_cast %23 : vector<17x128xf32> to vector<1x17x128xf32>
    tpu.vector_store %arg6[%c0_10, %c0_11, %c0_12], %26 {strides = array<i32>} : memref<1x17x128xf32, #tpu.memory_space<vmem>>, vector<1x17x128xf32>,
    %c0_13 = arith.constant 0 : index
    %c0_14 = arith.constant 0 : index
    %27 = vector.load %arg4[%c0_13, %c0_14] : memref<128x128xf32, #tpu.memory_space<vmem>>, vector<128x128xf32>
    %cst_15 = arith.constant dense<0.000000e+00> : vector<17x128xf32>
    %28 = tpu.matmul %23, %27, %cst_15 {dimension_numbers = #tpu.dot_dimension_numbers<[1], [0], [0], [1], [0, 0, 1, 1], [], []>} : vector<17x128xf32>, vector<128x128xf32>, vector<17x128xf32> -> vector<17x128xf32>
    %c0_16 = arith.constant 0 : index
    %c0_17 = arith.constant 0 : index
    %29 = vector.load %arg5[%c0_16, %c0_17] : memref<128x128xf32, #tpu.memory_space<vmem>>, vector<128x128xf32>
    %cst_18 = arith.constant dense<0.000000e+00> : vector<17x128xf32>
    %30 = tpu.matmul %23, %29, %cst_18 {dimension_numbers = #tpu.dot_dimension_numbers<[1], [0], [0], [1], [0, 0, 1, 1], [], []>} : vector<17x128xf32>, vector<128x128xf32>, vector<17x128xf32> -> vector<17x128xf32>
    %31 = vector.extract_strided_slice %28 {offsets = [0, 0], sizes = [17, 64], strides = [1, 1]} : vector<17x128xf32> to vector<17x64xf32>
    %32 = vector.extract_strided_slice %30 {offsets = [0, 0], sizes = [17, 64], strides = [1, 1]} : vector<17x128xf32> to vector<17x64xf32>
    %cst_19 = arith.constant dense<0.000000e+00> : vector<17x17xf32>
    %33 = tpu.matmul %31, %32, %cst_19 {dimension_numbers = #tpu.dot_dimension_numbers<[1], [1], [0], [0], [0, 0, 1, 0], [], []>} : vector<17x64xf32>, vector<17x64xf32>, vector<17x17xf32> -> vector<17x17xf32>
    %cst_20 = arith.constant 1.250000e-01 : f32
    %34 = vector.broadcast %cst_20 : f32 to vector<17x17xf32>
    %35 = arith.mulf %33, %34 : vector<17x17xf32>
    %cst_21 = arith.constant dense<0xFF800000> : vector<17xf32>
    %36 = vector.multi_reduction <maximumf>, %35, %cst_21 [1] : vector<17x17xf32> to vector<17xf32>
    %37 = vector.shape_cast %36 : vector<17xf32> to vector<17x1xf32>
    %38 = vector.broadcast %37 : vector<17x1xf32> to vector<17x17xf32>
    %39 = arith.subf %35, %38 : vector<17x17xf32>
    %40 = math.exp %39 : vector<17x17xf32>
    %cst_22 = arith.constant dense<0.000000e+00> : vector<17xf32>
    %41 = vector.multi_reduction <add>, %40, %cst_22 [1] : vector<17x17xf32> to vector<17xf32>
    %42 = vector.shape_cast %41 : vector<17xf32> to vector<17x1xf32>
    %43 = vector.broadcast %42 : vector<17x1xf32> to vector<17x17xf32>
    %44 = arith.divf %40, %43 : vector<17x17xf32>
    %c0_23 = arith.constant 0 : index
    %c0_24 = arith.constant 0 : index
    %c0_25 = arith.constant 0 : index
    %c0_26 = arith.constant 0 : index
    %45 = vector.load %arg7[%c0_23, %c0_24, %c0_25, %c0_26] : memref<1x2x17x17xf32, #tpu.memory_space<vmem>>, vector<1x1x17x17xf32>
    %46 = vector.shape_cast %45 : vector<1x1x17x17xf32> to vector<17x17xf32>
    %47 = vector.shape_cast %44 : vector<17x17xf32> to vector<1x1x17x17xf32>
    tpu.vector_store %arg7[%c0_23, %c0_24, %c0_25, %c0_26], %47 {strides = array<i32>} : memref<1x2x17x17xf32, #tpu.memory_space<vmem>>, vector<1x1x17x17xf32>,
    %48 = vector.extract_strided_slice %28 {offsets = [0, 64], sizes = [17, 64], strides = [1, 1]} : vector<17x128xf32> to vector<17x64xf32>
    %49 = vector.extract_strided_slice %30 {offsets = [0, 64], sizes = [17, 64], strides = [1, 1]} : vector<17x128xf32> to vector<17x64xf32>
    %cst_27 = arith.constant dense<0.000000e+00> : vector<17x17xf32>
    %50 = tpu.matmul %48, %49, %cst_27 {dimension_numbers = #tpu.dot_dimension_numbers<[1], [1], [0], [0], [0, 0, 1, 0], [], []>} : vector<17x64xf32>, vector<17x64xf32>, vector<17x17xf32> -> vector<17x17xf32>
    %cst_28 = arith.constant 1.250000e-01 : f32
    %51 = vector.broadcast %cst_28 : f32 to vector<17x17xf32>
    %52 = arith.mulf %50, %51 : vector<17x17xf32>
    %cst_29 = arith.constant dense<0xFF800000> : vector<17xf32>
    %53 = vector.multi_reduction <maximumf>, %52, %cst_29 [1] : vector<17x17xf32> to vector<17xf32>
    %54 = vector.shape_cast %53 : vector<17xf32> to vector<17x1xf32>
    %55 = vector.broadcast %54 : vector<17x1xf32> to vector<17x17xf32>
    %56 = arith.subf %52, %55 : vector<17x17xf32>
    %57 = math.exp %56 : vector<17x17xf32>
    %cst_30 = arith.constant dense<0.000000e+00> : vector<17xf32>
    %58 = vector.multi_reduction <add>, %57, %cst_30 [1] : vector<17x17xf32> to vector<17xf32>
    %59 = vector.shape_cast %58 : vector<17xf32> to vector<17x1xf32>
    %60 = vector.broadcast %59 : vector<17x1xf32> to vector<17x17xf32>
    %61 = arith.divf %57, %60 : vector<17x17xf32>
    %c0_31 = arith.constant 0 : index
    %c1 = arith.constant 1 : index
    %c0_32 = arith.constant 0 : index
    %c0_33 = arith.constant 0 : index
    %62 = vector.load %arg7[%c0_31, %c1, %c0_32, %c0_33] : memref<1x2x17x17xf32, #tpu.memory_space<vmem>>, vector<1x1x17x17xf32>
    %63 = vector.shape_cast %62 : vector<1x1x17x17xf32> to vector<17x17xf32>
    %64 = vector.shape_cast %61 : vector<17x17xf32> to vector<1x1x17x17xf32>
    tpu.vector_store %arg7[%c0_31, %c1, %c0_32, %c0_33], %64 {strides = array<i32>} : memref<1x2x17x17xf32, #tpu.memory_space<vmem>>, vector<1x1x17x17xf32>,
    return
  }
  func.func @transform_0(%arg0: i32) -> (i32, i32, i32) {
    %c0_i32 = arith.constant 0 : i32
    %c0_i32_0 = arith.constant 0 : i32
    %c0_i32_1 = arith.constant 0 : i32
    return %arg0, %c0_i32, %c0_i32_0 : i32, i32, i32
  }
  func.func @transform_1(%arg0: i32) -> (i32, i32) {
    %c0_i32 = arith.constant 0 : i32
    %c0_i32_0 = arith.constant 0 : i32
    %c0_i32_1 = arith.constant 0 : i32
    return %c0_i32, %c0_i32_0 : i32, i32
  }
  func.func @transform_2(%arg0: i32) -> (i32, i32) {
    %c0_i32 = arith.constant 0 : i32
    %c0_i32_0 = arith.constant 0 : i32
    %c0_i32_1 = arith.constant 0 : i32
    return %c0_i32, %c0_i32_0 : i32, i32
  }
  func.func @transform_3(%arg0: i32) -> (i32, i32) {
    %c0_i32 = arith.constant 0 : i32
    %c0_i32_0 = arith.constant 0 : i32
    %c0_i32_1 = arith.constant 0 : i32
    return %c0_i32, %c0_i32_0 : i32, i32
  }
  func.func @transform_4(%arg0: i32) -> (i32, i32) {
    %c0_i32 = arith.constant 0 : i32
    %c0_i32_0 = arith.constant 0 : i32
    %c0_i32_1 = arith.constant 0 : i32
    return %c0_i32, %c0_i32_0 : i32, i32
  }
  func.func @transform_5(%arg0: i32) -> (i32, i32, i32) {
    %c0_i32 = arith.constant 0 : i32
    %c0_i32_0 = arith.constant 0 : i32
    %c0_i32_1 = arith.constant 0 : i32
    return %arg0, %c0_i32, %c0_i32_0 : i32, i32, i32
  }
  func.func @transform_6(%arg0: i32) -> (i32, i32, i32, i32) {
    %c0_i32 = arith.constant 0 : i32
    %c0_i32_0 = arith.constant 0 : i32
    %c0_i32_1 = arith.constant 0 : i32
    %c0_i32_2 = arith.constant 0 : i32
    return %arg0, %c0_i32, %c0_i32_0, %c0_i32_1 : i32, i32, i32, i32
  }
}

module attributes {stable_mosaic.version = 11 : i64} {
  func.func @_translution_kernel(%arg0: i32, %arg1: i32, %arg2: memref<17x17xi32, #tpu.memory_space<smem>>, %arg3: memref<1x2x128xf32, #tpu.memory_space<vmem>>, %arg4: memref<1x1x2x2xf32, #tpu.memory_space<vmem>>, %arg5: memref<1x128x128xf32, #tpu.memory_space<vmem>>, %arg6: memref<2x128xf32, #tpu.memory_space<vmem>>, %arg7: memref<128x128xf32, #tpu.memory_space<vmem>>, %arg8: memref<1x128xf32, #tpu.memory_space<vmem>>, %arg9: memref<1x2x128xf32, #tpu.memory_space<vmem>>, %arg10: memref<2x128xf32, #tpu.memory_space<vmem>>) attributes {dimension_semantics = [#tpu.dimension_semantics<parallel>, #tpu.dimension_semantics<arbitrary>], iteration_bounds = array<i64: 17, 17>, scalar_prefetch = 1 : i64, scratch_operands = 1 : i64, tpu.core_type = #tpu.core_type<tc>, window_params = [{transform_indices = @transform_0, window_bounds = array<i64: 1, 2, 128>}, {transform_indices = @transform_1, window_bounds = array<i64: 1, 1, 2, 2>}, {transform_indices = @transform_2, window_bounds = array<i64: 1, 128, 128>}, {pipeline_mode = #tpu.pipeline_mode<synchronous>, transform_indices = @transform_3, window_bounds = array<i64: 2, 128>}, {pipeline_mode = #tpu.pipeline_mode<synchronous>, transform_indices = @transform_4, window_bounds = array<i64: 128, 128>}, {pipeline_mode = #tpu.pipeline_mode<synchronous>, transform_indices = @transform_5, window_bounds = array<i64: 1, 128>}, {transform_indices = @transform_6, window_bounds = array<i64: 1, 2, 128>}]} {
    %c0_i32 = arith.constant 0 : i32
    %0 = arith.cmpi eq, %arg1, %c0_i32 : i32
    %1 = arith.extui %0 : i1 to i32
    %c0_i32_0 = arith.constant 0 : i32
    %2 = arith.cmpi ne, %1, %c0_i32_0 : i32
    scf.if %2 {
      %cst_18 = arith.constant 0.000000e+00 : f32
      %19 = vector.broadcast %cst_18 : f32 to vector<2x128xf32>
      %c0_19 = arith.constant 0 : index
      %c0_20 = arith.constant 0 : index
      %20 = vector.load %arg10[%c0_19, %c0_20] : memref<2x128xf32, #tpu.memory_space<vmem>>, vector<2x128xf32>
      tpu.vector_store %arg10[%c0_19, %c0_20], %19 {strides = array<i32>} : memref<2x128xf32, #tpu.memory_space<vmem>>, vector<2x128xf32>,
    } else {
    }
    %c0 = arith.constant 0 : index
    %c0_1 = arith.constant 0 : index
    %c0_2 = arith.constant 0 : index
    %3 = vector.load %arg3[%c0, %c0_1, %c0_2] : memref<1x2x128xf32, #tpu.memory_space<vmem>>, vector<1x2x128xf32>
    %4 = vector.shape_cast %3 : vector<1x2x128xf32> to vector<2x128xf32>
    %c0_3 = arith.constant 0 : index
    %c0_4 = arith.constant 0 : index
    %c0_5 = arith.constant 0 : index
    %5 = vector.load %arg5[%c0_3, %c0_4, %c0_5] : memref<1x128x128xf32, #tpu.memory_space<vmem>>, vector<1x128x128xf32>
    %6 = vector.shape_cast %5 : vector<1x128x128xf32> to vector<128x128xf32>
    %cst = arith.constant dense<0.000000e+00> : vector<2x128xf32>
    %7 = tpu.matmul %4, %6, %cst {dimension_numbers = #tpu.dot_dimension_numbers<[1], [0], [0], [1], [0, 0, 1, 1], [], []>} : vector<2x128xf32>, vector<128x128xf32>, vector<2x128xf32> -> vector<2x128xf32>
    %c0_6 = arith.constant 0 : index
    %c0_7 = arith.constant 0 : index
    %c0_8 = arith.constant 0 : index
    %c0_9 = arith.constant 0 : index
    %8 = vector.load %arg4[%c0_6, %c0_7, %c0_8, %c0_9] : memref<1x1x2x2xf32, #tpu.memory_space<vmem>>, vector<1x1x2x2xf32>
    %9 = vector.shape_cast %8 : vector<1x1x2x2xf32> to vector<2x2xf32>
    %c0_10 = arith.constant 0 : index
    %c0_11 = arith.constant 0 : index
    %10 = vector.load %arg6[%c0_10, %c0_11] : memref<2x128xf32, #tpu.memory_space<vmem>>, vector<2x128xf32>
    %cst_12 = arith.constant dense<0.000000e+00> : vector<2x128xf32>
    %11 = tpu.matmul %9, %10, %cst_12 {dimension_numbers = #tpu.dot_dimension_numbers<[1], [0], [0], [1], [0, 0, 1, 1], [], []>} : vector<2x2xf32>, vector<2x128xf32>, vector<2x128xf32> -> vector<2x128xf32>
    %c0_13 = arith.constant 0 : index
    %c0_14 = arith.constant 0 : index
    %12 = vector.load %arg10[%c0_13, %c0_14] : memref<2x128xf32, #tpu.memory_space<vmem>>, vector<2x128xf32>
    %13 = arith.mulf %11, %7 : vector<2x128xf32>
    %14 = arith.addf %12, %13 : vector<2x128xf32>
    %c0_15 = arith.constant 0 : index
    %c0_16 = arith.constant 0 : index
    %15 = vector.load %arg10[%c0_15, %c0_16] : memref<2x128xf32, #tpu.memory_space<vmem>>, vector<2x128xf32>
    tpu.vector_store %arg10[%c0_15, %c0_16], %14 {strides = array<i32>} : memref<2x128xf32, #tpu.memory_space<vmem>>, vector<2x128xf32>,
    %c16_i32 = arith.constant 16 : i32
    %16 = arith.cmpi eq, %arg1, %c16_i32 : i32
    %17 = arith.extui %16 : i1 to i32
    %c0_i32_17 = arith.constant 0 : i32
    %18 = arith.cmpi ne, %17, %c0_i32_17 : i32
    scf.if %18 {
      %c0_18 = arith.constant 0 : index
      %c0_19 = arith.constant 0 : index
      %19 = vector.load %arg10[%c0_18, %c0_19] : memref<2x128xf32, #tpu.memory_space<vmem>>, vector<2x128xf32>
      %c0_20 = arith.constant 0 : index
      %c0_21 = arith.constant 0 : index
      %20 = vector.load %arg7[%c0_20, %c0_21] : memref<128x128xf32, #tpu.memory_space<vmem>>, vector<128x128xf32>
      %cst_22 = arith.constant dense<0.000000e+00> : vector<2x128xf32>
      %21 = tpu.matmul %19, %20, %cst_22 {dimension_numbers = #tpu.dot_dimension_numbers<[1], [0], [0], [1], [0, 0, 1, 1], [], []>} : vector<2x128xf32>, vector<128x128xf32>, vector<2x128xf32> -> vector<2x128xf32>
      %c0_23 = arith.constant 0 : index
      %c0_24 = arith.constant 0 : index
      %22 = vector.load %arg8[%c0_23, %c0_24] : memref<1x128xf32, #tpu.memory_space<vmem>>, vector<1x128xf32>
      %23 = vector.broadcast %22 : vector<1x128xf32> to vector<2x128xf32>
      %24 = arith.addf %21, %23 : vector<2x128xf32>
      %c0_25 = arith.constant 0 : index
      %c0_26 = arith.constant 0 : index
      %c0_27 = arith.constant 0 : index
      %25 = vector.load %arg9[%c0_25, %c0_26, %c0_27] : memref<1x2x128xf32, #tpu.memory_space<vmem>>, vector<1x2x128xf32>
      %26 = vector.shape_cast %25 : vector<1x2x128xf32> to vector<2x128xf32>
      %27 = vector.shape_cast %24 : vector<2x128xf32> to vector<1x2x128xf32>
      tpu.vector_store %arg9[%c0_25, %c0_26, %c0_27], %27 {strides = array<i32>} : memref<1x2x128xf32, #tpu.memory_space<vmem>>, vector<1x2x128xf32>,
    } else {
    }
    return
  }
  func.func @transform_0(%arg0: i32, %arg1: i32, %arg2: memref<17x17xi32, #tpu.memory_space<smem>>) -> (i32, i32, i32) {
    %c0_i32 = arith.constant 0 : i32
    %c0_i32_0 = arith.constant 0 : i32
    %c0_i32_1 = arith.constant 0 : i32
    return %arg1, %c0_i32, %c0_i32_0 : i32, i32, i32
  }
  func.func @transform_1(%arg0: i32, %arg1: i32, %arg2: memref<17x17xi32, #tpu.memory_space<smem>>) -> (i32, i32, i32, i32) {
    %c0_i32 = arith.constant 0 : i32
    %c0_i32_0 = arith.constant 0 : i32
    %c0_i32_1 = arith.constant 0 : i32
    return %arg0, %arg1, %c0_i32, %c0_i32_0 : i32, i32, i32, i32
  }
  func.func @transform_2(%arg0: i32, %arg1: i32, %arg2: memref<17x17xi32, #tpu.memory_space<smem>>) -> (i32, i32, i32) {
    %0 = arith.index_cast %arg0 : i32 to index
    %1 = arith.index_cast %arg1 : i32 to index
    %2 = memref.load %arg2[%0, %1] : memref<17x17xi32, #tpu.memory_space<smem>>
    %c0_i32 = arith.constant 0 : i32
    %c0_i32_0 = arith.constant 0 : i32
    %c0_i32_1 = arith.constant 0 : i32
    return %2, %c0_i32, %c0_i32_0 : i32, i32, i32
  }
  func.func @transform_3(%arg0: i32, %arg1: i32, %arg2: memref<17x17xi32, #tpu.memory_space<smem>>) -> (i32, i32) {
    %c0_i32 = arith.constant 0 : i32
    %c0_i32_0 = arith.constant 0 : i32
    %c0_i32_1 = arith.constant 0 : i32
    return %c0_i32, %c0_i32_0 : i32, i32
  }
  func.func @transform_4(%arg0: i32, %arg1: i32, %arg2: memref<17x17xi32, #tpu.memory_space<smem>>) -> (i32, i32) {
    %c0_i32 = arith.constant 0 : i32
    %c0_i32_0 = arith.constant 0 : i32
    %c0_i32_1 = arith.constant 0 : i32
    return %c0_i32, %c0_i32_0 : i32, i32
  }
  func.func @transform_5(%arg0: i32, %arg1: i32, %arg2: memref<17x17xi32, #tpu.memory_space<smem>>) -> (i32, i32) {
    %c0_i32 = arith.constant 0 : i32
    %c0_i32_0 = arith.constant 0 : i32
    %c0_i32_1 = arith.constant 0 : i32
    return %c0_i32, %c0_i32_0 : i32, i32
  }
  func.func @transform_6(%arg0: i32, %arg1: i32, %arg2: memref<17x17xi32, #tpu.memory_space<smem>>) -> (i32, i32, i32) {
    %c0_i32 = arith.constant 0 : i32
    %c0_i32_0 = arith.constant 0 : i32
    %c0_i32_1 = arith.constant 0 : i32
    return %arg0, %c0_i32, %c0_i32_0 : i32, i32, i32
  }
}

</mosaic_0001>

<llo_original>
// kernel: attention_pallas.2
$region0: #{attention_pallas.2}
  #allocation0 [shape = 'u32[]', space=smem, size = 0x4, offset = 0x4, fixed_abs, tag = 'smem constant byte address 0x4 - core index']
  #allocation1 [shape = 'u32[144,128]{1,0:T(1,128)}', space=vmem, size = 0x12000, scoped, tag = 'internal scratch']
  %s0 = inlined_call_operand.vmem [shape: f32[2,17,128], index: 0, kind: input, shape index: {}]
  %s1 = inlined_call_operand.hbm [shape: f32[1,128], index: 1, kind: input, shape index: {}]
  %s2 = inlined_call_operand.hbm [shape: f32[1,128], index: 2, kind: input, shape index: {}]
  %s3 = inlined_call_operand.hbm [shape: f32[128,128], index: 3, kind: input, shape index: {}]
  %s4 = inlined_call_operand.hbm [shape: f32[128,128], index: 4, kind: input, shape index: {}]
  %s5 = inlined_call_operand.vmem [shape: f32[2,17,128], index: 5, kind: output, shape index: {0}]
  %s6 = inlined_call_operand.vmem [shape: f32[2,2,17,17], index: 6, kind: output, shape index: {1}]
  %7 = xla_tuple %s5, %s6
  %s8 = sld [smem:[#allocation0]]
  $region77: #{attention_pallas.2} parent=0
    _
  %s10 = ssub.s32 1, %s8
  %s11 = scalar_select 0, %s10, %s8
  $region1: #{attention_pallas.2} parent=0
    #allocation2 [shape = 'u8[512]{0}', space=vmem, size = 0x400, scoped, tag = 'input window, operand 1, single buffered']
    #allocation3 [shape = 's32[2]{0}', space=sflag, size = 0x8, scoped, tag = 'scoped memory for attention_pallas.2']
    #allocation4 [shape = 'u8[512]{0}', space=vmem, size = 0x400, scoped, tag = 'input window, operand 2, single buffered']
    #allocation5 [shape = 's32[1]{0}', space=sflag, size = 0x4, scoped, tag = 'scoped memory for attention_pallas.2']
    #allocation6 [shape = 'u8[65536]{0}', space=vmem, size = 0x10000, scoped, tag = 'input window, operand 3, single buffered']
    #allocation7 [shape = 'u8[65536]{0}', space=vmem, size = 0x10000, scoped, tag = 'input window, operand 4, single buffered']
    #allocation8 [shape = 's32[1]{0}', space=sflag, size = 0x4, scoped, tag = 'scoped memory for attention_pallas.2']
    %12 = vsyncpa [#allocation3], 0
    %13 = vsyncpa [#allocation5], 0
    %14 = vsyncpa [#allocation8], 0
    loop: start=0, step=1, limit=4
    $region2: #{attention_pallas.2} parent=1 // loop_pre_header
      _
    $region3: #{attention_pallas.2} parent=1 // loop_header
      %s16 = sphi 0, %s20
      %p17 = scmp.ge.s32.totalorder %s16, 4
      %s26 = sphi 0, %s28
      %s29 = sphi 0, %s26
      %s30 = sphi 0, %s29
      %s46 = sphi 0, %s30
      %s50 = sphi 0, %s50
      %s52 = sphi 0, %s50
      %s53 = sphi 0, %s52
      %s67 = sphi 0, %s53
      %s71 = sphi 0, %s71
      %s73 = sphi 0, %s71
      %s74 = sphi 0, %s73
      %s88 = sphi 0, %s74
      %s92 = sphi 0, %s92
      %s94 = sphi 0, %s92
      %s95 = sphi 0, %s94
      %s109 = sphi 0, %s95
      %s113 = sphi 0, %s113
      %s115 = sphi 0, %s113
      %s116 = sphi 0, %s115
      %s130 = sphi 0, %s116
      %s136 = sphi 0, %s138
      %s139 = sphi 0, %s136
      %s140 = sphi 0, %s139
      %s156 = sphi 0, %s140
      %s162 = sphi 0, %s164
      %s165 = sphi 0, %s162
      %s166 = sphi 0, %s165
      %s182 = sphi 0, %s166
    $region4: #{attention_pallas.2} parent=1 // loop_header_branch
      %19 = sbr.rel (%p17) target = $region8
    $region5: #{attention_pallas.2} parent=1 // loop_body
      %s21 = ssub.s32 %s16, 1
      %s22 = ssub.s32 %s16, 2
      %s23 = sadd.s32 %s16, 1
      %s24 = ssub.s32 %s16, %s23
      %p25 = scmp.eq.s32.totalorder %s24, 0
      %s27 = sadd.s32 %s26, 1
      %s28 = scalar_select %p25, %s26, %s27
      %p31 = pneg %p25
      %p32 = scmp.eq.s32.totalorder %s16, 1
      %p33 = por %p31, %p32
      %p34 = scmp.ne.s32.totalorder %s26, %s29
      %p35 = scmp.eq.s32.totalorder %s16, 0
      %p36 = por %p34, %p35
      %p37 = scmp.ne.s32.totalorder %s26, %s29
      %p38 = scmp.eq.s32.totalorder %s21, 1
      %p39 = por %p37, %p38
      %p40 = scmp.ne.s32.totalorder %s29, %s30
      %p41 = scmp.eq.s32.totalorder %s21, 0
      %p42 = por %p40, %p41
      %p43 = scmp.ne.s32.totalorder %s29, %s30
      %p44 = scmp.eq.s32.totalorder %s22, 1
      %p45 = por %p43, %p44
      %p47 = scmp.ne.s32.totalorder %s30, %s46
      %p48 = scmp.eq.s32.totalorder %s22, 0
      %p49 = por %p47, %p48
      %s51 = sadd.s32 %s50, 1
      %p54 = scmp.eq.s32.totalorder %s16, 1
      %p55 = scmp.ne.s32.totalorder %s50, %s52
      %p56 = scmp.eq.s32.totalorder %s16, 0
      %p57 = por %p55, %p56
      %p58 = scmp.ne.s32.totalorder %s50, %s52
      %p59 = scmp.eq.s32.totalorder %s21, 1
      %p60 = por %p58, %p59
      %p61 = scmp.ne.s32.totalorder %s52, %s53
      %p62 = scmp.eq.s32.totalorder %s21, 0
      %p63 = por %p61, %p62
      %p64 = scmp.ne.s32.totalorder %s52, %s53
      %p65 = scmp.eq.s32.totalorder %s22, 1
      %p66 = por %p64, %p65
      %p68 = scmp.ne.s32.totalorder %s53, %s67
      %p69 = scmp.eq.s32.totalorder %s22, 0
      %p70 = por %p68, %p69
      %s72 = sadd.s32 %s71, 1
      %p75 = scmp.eq.s32.totalorder %s16, 1
      %p76 = scmp.ne.s32.totalorder %s71, %s73
      %p77 = scmp.eq.s32.totalorder %s16, 0
      %p78 = por %p76, %p77
      %p79 = scmp.ne.s32.totalorder %s71, %s73
      %p80 = scmp.eq.s32.totalorder %s21, 1
      %p81 = por %p79, %p80
      %p82 = scmp.ne.s32.totalorder %s73, %s74
      %p83 = scmp.eq.s32.totalorder %s21, 0
      %p84 = por %p82, %p83
      %p85 = scmp.ne.s32.totalorder %s73, %s74
      %p86 = scmp.eq.s32.totalorder %s22, 1
      %p87 = por %p85, %p86
      %p89 = scmp.ne.s32.totalorder %s74, %s88
      %p90 = scmp.eq.s32.totalorder %s22, 0
      %p91 = por %p89, %p90
      %s93 = sadd.s32 %s92, 1
      %p96 = scmp.eq.s32.totalorder %s16, 1
      %p97 = scmp.ne.s32.totalorder %s92, %s94
      %p98 = scmp.eq.s32.totalorder %s16, 0
      %p99 = por %p97, %p98
      %p100 = scmp.ne.s32.totalorder %s92, %s94
      %p101 = scmp.eq.s32.totalorder %s21, 1
      %p102 = por %p100, %p101
      %p103 = scmp.ne.s32.totalorder %s94, %s95
      %p104 = scmp.eq.s32.totalorder %s21, 0
      %p105 = por %p103, %p104
      %p106 = scmp.ne.s32.totalorder %s94, %s95
      %p107 = scmp.eq.s32.totalorder %s22, 1
      %p108 = por %p106, %p107
      %p110 = scmp.ne.s32.totalorder %s95, %s109
      %p111 = scmp.eq.s32.totalorder %s22, 0
      %p112 = por %p110, %p111
      %s114 = sadd.s32 %s113, 1
      %p117 = scmp.eq.s32.totalorder %s16, 1
      %p118 = scmp.ne.s32.totalorder %s113, %s115
      %p119 = scmp.eq.s32.totalorder %s16, 0
      %p120 = por %p118, %p119
      %p121 = scmp.ne.s32.totalorder %s113, %s115
      %p122 = scmp.eq.s32.totalorder %s21, 1
      %p123 = por %p121, %p122
      %p124 = scmp.ne.s32.totalorder %s115, %s116
      %p125 = scmp.eq.s32.totalorder %s21, 0
      %p126 = por %p124, %p125
      %p127 = scmp.ne.s32.totalorder %s115, %s116
      %p128 = scmp.eq.s32.totalorder %s22, 1
      %p129 = por %p127, %p128
      %p131 = scmp.ne.s32.totalorder %s116, %s130
      %p132 = scmp.eq.s32.totalorder %s22, 0
      %p133 = por %p131, %p132
      %s134 = ssub.s32 %s16, %s23
      %p135 = scmp.eq.s32.totalorder %s134, 0
      %s137 = sadd.s32 %s136, 1
      %s138 = scalar_select %p135, %s136, %s137
      %p141 = pneg %p135
      %p142 = scmp.eq.s32.totalorder %s16, 1
      %p143 = por %p141, %p142
      %p144 = scmp.ne.s32.totalorder %s136, %s139
      %p145 = scmp.eq.s32.totalorder %s16, 0
      %p146 = por %p144, %p145
      %p147 = scmp.ne.s32.totalorder %s136, %s139
      %p148 = scmp.eq.s32.totalorder %s21, 1
      %p149 = por %p147, %p148
      %p150 = scmp.ne.s32.totalorder %s139, %s140
      %p151 = scmp.eq.s32.totalorder %s21, 0
      %p152 = por %p150, %p151
      %p153 = scmp.ne.s32.totalorder %s139, %s140
      %p154 = scmp.eq.s32.totalorder %s22, 1
      %p155 = por %p153, %p154
      %p157 = scmp.ne.s32.totalorder %s140, %s156
      %p158 = scmp.eq.s32.totalorder %s22, 0
      %p159 = por %p157, %p158
      %s160 = ssub.s32 %s16, %s23
      %p161 = scmp.eq.s32.totalorder %s160, 0
      %s163 = sadd.s32 %s162, 1
      %s164 = scalar_select %p161, %s162, %s163
      %p167 = pneg %p161
      %p168 = scmp.eq.s32.totalorder %s16, 1
      %p169 = por %p167, %p168
      %p170 = scmp.ne.s32.totalorder %s162, %s165
      %p171 = scmp.eq.s32.totalorder %s16, 0
      %p172 = por %p170, %p171
      %p173 = scmp.ne.s32.totalorder %s162, %s165
      %p174 = scmp.eq.s32.totalorder %s21, 1
      %p175 = por %p173, %p174
      %p176 = scmp.ne.s32.totalorder %s165, %s166
      %p177 = scmp.eq.s32.totalorder %s21, 0
      %p178 = por %p176, %p177
      %p179 = scmp.ne.s32.totalorder %s165, %s166
      %p180 = scmp.eq.s32.totalorder %s22, 1
      %p181 = por %p179, %p180
      %p183 = scmp.ne.s32.totalorder %s166, %s182
      %p184 = scmp.eq.s32.totalorder %s22, 0
      %p185 = por %p183, %p184
      %p186 = scmp.le.s32.totalorder 1, %s16
      %p187 = scmp.lt.s32.totalorder %s16, 3
      %p188 = pnand %p186, %p187
      %p189 = pneg %p188
      // Predicated region
      $region9: #{attention_pallas.2} parent=5 // pred_check
        _
      $region10: #{attention_pallas.2} parent=5 // pred_check_branch
        %191 = sbr.rel (%p188) target = $region12
      $region11: #{attention_pallas.2} parent=5 // pred_region
        %s192 = ssub.s32 %s16, 1
        // Predicated region
        $region13: #{attention_pallas.2} parent=11 // pred_check
          %p193 = pneg %p63
        $region14: #{attention_pallas.2} parent=11 // pred_check_branch
          %195 = sbr.rel (%p193) target = $region16
        $region15: #{attention_pallas.2} parent=11 // pred_region
          %s197 = ssub.s32 16, 16
          %198 = vsyncadd [#allocation3], %s197
          %s200 = sshll.u32 [#allocation2], 4
          %s201 = int_to_ptr.vmem [resolvable:$true] %s200
          %203 = dma.hbm_to_vmem [thread:$0]  %s1, 16, %s201, [#allocation3]
        $region16: #{attention_pallas.2} parent=11 // pred_fallthru
          _
        // Predicated region
        $region17: #{attention_pallas.2} parent=11 // pred_check
          %p204 = pneg %p84
        $region18: #{attention_pallas.2} parent=11 // pred_check_branch
          %206 = sbr.rel (%p204) target = $region20
        $region19: #{attention_pallas.2} parent=11 // pred_region
          %s208 = ssub.s32 16, 16
          %209 = vsyncadd [#allocation5], %s208
          %s211 = sshll.u32 [#allocation4], 4
          %s212 = int_to_ptr.vmem [resolvable:$true] %s211
          %214 = dma.hbm_to_vmem [thread:$0]  %s2, 16, %s212, [#allocation5]
        $region20: #{attention_pallas.2} parent=11 // pred_fallthru
          _
        // Predicated region
        $region21: #{attention_pallas.2} parent=11 // pred_check
          %p215 = pneg %p105
        $region22: #{attention_pallas.2} parent=11 // pred_check_branch
          %217 = sbr.rel (%p215) target = $region24
        $region23: #{attention_pallas.2} parent=11 // pred_region
          %s219 = ssub.s32 2048, 2048
          %220 = vsyncadd [#allocation5], %s219
          %s221 = sshll.u32 [#allocation6], 4
          %s222 = int_to_ptr.vmem [resolvable:$true] %s221
          %227 = dma.hbm_to_vmem [thread:$0]  %s3, 2048, %s222, [#allocation5], 128, 128, 8
        $region24: #{attention_pallas.2} parent=11 // pred_fallthru
          _
        // Predicated region
        $region25: #{attention_pallas.2} parent=11 // pred_check
          %p228 = pneg %p126
        $region26: #{attention_pallas.2} parent=11 // pred_check_branch
          %230 = sbr.rel (%p228) target = $region28
        $region27: #{attention_pallas.2} parent=11 // pred_region
          %s232 = ssub.s32 2048, 2048
          %233 = vsyncadd [#allocation8], %s232
          %s234 = sshll.u32 [#allocation7], 4
          %s235 = int_to_ptr.vmem [resolvable:$true] %s234
          %240 = dma.hbm_to_vmem [thread:$0]  %s4, 2048, %s235, [#allocation8], 128, 128, 8
        $region28: #{attention_pallas.2} parent=11 // pred_fallthru
          _
      $region12: #{attention_pallas.2} parent=5 // pred_fallthru
        _
      %p241 = scmp.lt.s32.totalorder %s16, 2
      // Predicated region
      $region29: #{attention_pallas.2} parent=5 // pred_check
        %p242 = pneg %p241
      $region30: #{attention_pallas.2} parent=5 // pred_check_branch
        %244 = sbr.rel (%p242) target = $region32
      $region31: #{attention_pallas.2} parent=5 // pred_region
        // Predicated region
        $region33: #{attention_pallas.2} parent=31 // pred_check
          %p245 = pneg %p36
        $region34: #{attention_pallas.2} parent=31 // pred_check_branch
          %247 = sbr.rel (%p245) target = $region36
        $region35: #{attention_pallas.2} parent=31 // pred_region
          %p248 = scmp.lt.s32.totalorder %s16, 1
          %s249 = scalar_select %p248, %s16, 1
          %s250 = smul.addr %s249, 3
          %s251 = smul.addr %s250, 8
          %s252 = scalar_lea.vmem %s0, %s251
        $region36: #{attention_pallas.2} parent=31 // pred_fallthru
          _
      $region32: #{attention_pallas.2} parent=5 // pred_fallthru
        _
      %p253 = scmp.le.s32.totalorder 1, %s16
      %p254 = scmp.lt.s32.totalorder %s16, 3
      %p255 = pnand %p253, %p254
      %p256 = pneg %p255
      // Predicated region
      $region37: #{attention_pallas.2} parent=5 // pred_check
        _
      $region38: #{attention_pallas.2} parent=5 // pred_check_branch
        %258 = sbr.rel (%p255) target = $region40
      $region39: #{attention_pallas.2} parent=5 // pred_region
        %s259 = ssub.s32 %s16, 1
        // Predicated region
        $region41: #{attention_pallas.2} parent=39 // pred_check
          %p260 = pneg %p63
        $region42: #{attention_pallas.2} parent=39 // pred_check_branch
          %262 = sbr.rel (%p260) target = $region44
        $region43: #{attention_pallas.2} parent=39 // pred_region
          %263 = dma.done [#allocation3], 16
        $region44: #{attention_pallas.2} parent=39 // pred_fallthru
          _
        // Predicated region
        $region45: #{attention_pallas.2} parent=39 // pred_check
          %p264 = pneg %p84
        $region46: #{attention_pallas.2} parent=39 // pred_check_branch
          %266 = sbr.rel (%p264) target = $region48
        $region47: #{attention_pallas.2} parent=39 // pred_region
          %267 = dma.done [#allocation5], 16
        $region48: #{attention_pallas.2} parent=39 // pred_fallthru
          _
        // Predicated region
        $region49: #{attention_pallas.2} parent=39 // pred_check
          %p268 = pneg %p105
        $region50: #{attention_pallas.2} parent=39 // pred_check_branch
          %270 = sbr.rel (%p268) target = $region52
        $region51: #{attention_pallas.2} parent=39 // pred_region
          %271 = dma.done [#allocation5], 2048
        $region52: #{attention_pallas.2} parent=39 // pred_fallthru
          _
        // Predicated region
        $region53: #{attention_pallas.2} parent=39 // pred_check
          %p272 = pneg %p126
        $region54: #{attention_pallas.2} parent=39 // pred_check_branch
          %274 = sbr.rel (%p272) target = $region56
        $region55: #{attention_pallas.2} parent=39 // pred_region
          %275 = dma.done [#allocation8], 2048
        $region56: #{attention_pallas.2} parent=39 // pred_fallthru
          _
        %p276 = scmp.lt.s32.totalorder %s21, 1
        %s277 = scalar_select %p276, %s21, 1
        %s278 = smul.addr %s277, 3
        %s279 = smul.addr %s278, 8
        %s280 = scalar_lea.vmem %s0, %s279
        %p281 = pneg %p42
        %p282 = pneg %p39
        %p283 = pneg %p63
        %p284 = pneg %p60
        %p285 = pneg %p84
        %p286 = pneg %p81
        %p287 = pneg %p105
        %p288 = pneg %p102
        %p289 = pneg %p126
        %p290 = pneg %p123
        %p291 = pneg %p152
        %p292 = pneg %p149
        %p293 = scmp.lt.s32.totalorder %s21, 1
        %s294 = scalar_select %p293, %s21, 1
        %s295 = smul.addr %s294, 3
        %s296 = smul.addr %s295, 8
        %s297 = scalar_lea.vmem %s5, %s296
        %p298 = pneg %p178
        %p299 = pneg %p175
        %p300 = scmp.lt.s32.totalorder %s21, 1
        %s301 = scalar_select %p300, %s21, 1
        %s302 = smul.addr %s301, 6
        %s303 = smul.addr %s302, 8
        %s304 = scalar_lea.vmem %s6, %s303
        %p305 = scmp.lt.s32.totalorder %s21, 1
        %s306 = scalar_select %p305, %s21, 1
        %s307 = smul.addr %s306, 3
        %s308 = smul.addr %s307, 8
        %s309 = scalar_lea.vmem %s0, %s308
        %p310 = scmp.lt.s32.totalorder %s21, 1
        %s311 = scalar_select %p310, %s21, 1
        %s312 = smul.addr %s311, 3
        %s313 = smul.addr %s312, 8
        %s314 = scalar_lea.vmem %s5, %s313
        %p315 = scmp.lt.s32.totalorder %s21, 1
        %s316 = scalar_select %p315, %s21, 1
        %s317 = smul.addr %s316, 6
        %s318 = smul.addr %s317, 8
        %s319 = scalar_lea.vmem %s6, %s318
        %v320 = vld [vmem:[%s309] sm:$0xff]
        %v321 = vld [vmem:[%s309 + $0x8] sm:$0xff]
        %v322 = vld [vmem:[%s309 + $0x10] sm:$0x1]
        %323 = vadd.xlane.f32.xlu0 %v320
        %v324 = vpop.xlane.xlu0 %323
        %325 = vadd.xlane.f32.xlu0 %v321
        %v326 = vpop.xlane.xlu0 %325
        %vm327 = vcmask 1040384
        %v328 = vsel %vm327, %v322, 0.0
        %329 = vadd.xlane.f32.xlu0 %v328
        %v330 = vpop.xlane.xlu0 %329
        %v331 = vrcp.pop 128.0
        %v332 = vmul.f32 %v324, %v331
        %v333 = vmul.f32 %v326, %v331
        %v334 = vmul.f32 %v330, %v331
        %v335 = vsub.f32 %v320, %v332
        %v336 = vsub.f32 %v321, %v333
        %v337 = vsub.f32 %v322, %v334
        %v338 = vmul.f32 %v335, %v335
        %v339 = vmul.f32 %v336, %v336
        %v340 = vmul.f32 %v337, %v337
        %341 = vadd.xlane.f32.xlu0 %v338
        %v342 = vpop.xlane.xlu0 %341
        %343 = vadd.xlane.f32.xlu0 %v339
        %v344 = vpop.xlane.xlu0 %343
        %v345 = vsel %vm327, %v340, 0.0
        %346 = vadd.xlane.f32.xlu0 %v345
        %v347 = vpop.xlane.xlu0 %346
        %v348 = vmul.f32 %v342, %v331
        %v349 = vmul.f32 %v344, %v331
        %v350 = vmul.f32 %v347, %v331
        %v351 = vadd.f32 %v348, 1e-05
        %v352 = vadd.f32 %v349, 1e-05
        %v353 = vadd.f32 %v350, 1e-05
        %v354 = vrsqrt.pop %v351
        %v355 = vrsqrt.pop %v352
        %v356 = vrsqrt.pop %v353
        %v357 = vmul.f32 %v335, %v354
        %v358 = vmul.f32 %v336, %v355
        %v359 = vmul.f32 %v337, %v356
        %v360 = vld [vmem:[#allocation2] sm:$0x1]
        %v362 = vlaneseq
        %v363 = vshrl.u32 %v362, 7
        %v364 = vsub.s32 0, %v363
        %v365 = vrot.slane %v360, %v364
        %v367 = vmul.f32 %v357, %v365
        %v368 = vmul.f32 %v358, %v365
        %v369 = vmul.f32 %v359, %v365
        %v370 = vld [vmem:[#allocation4] sm:$0x1]
        %v372 = vlaneseq
        %v373 = vshrl.u32 %v372, 7
        %v374 = vsub.s32 0, %v373
        %v375 = vrot.slane %v370, %v374
        %v377 = vadd.f32 %v367, %v375
        %v378 = vadd.f32 %v368, %v375
        %v379 = vadd.f32 %v369, %v375
        %380 = vst [vmem:[%s314] sm:$0xff] %v377
        %381 = vst [vmem:[%s314 + $0x8] sm:$0xff] %v378
        %382 = vst [vmem:[%s314 + $0x10] sm:$0x1] %v379
        %v383 = vld [vmem:[#allocation6] sm:$0xff]
        %v384 = vld [vmem:[#allocation6 + $0x8] sm:$0xff]
        %v385 = vld [vmem:[#allocation6 + $0x10] sm:$0xff]
        %v386 = vld [vmem:[#allocation6 + $0x18] sm:$0xff]
        %v387 = vld [vmem:[#allocation6 + $0x20] sm:$0xff]
        %v388 = vld [vmem:[#allocation6 + $0x28] sm:$0xff]
        %v389 = vld [vmem:[#allocation6 + $0x30] sm:$0xff]
        %v390 = vld [vmem:[#allocation6 + $0x38] sm:$0xff]
        %v391 = vld [vmem:[#allocation6 + $0x40] sm:$0xff]
        %v392 = vld [vmem:[#allocation6 + $0x48] sm:$0xff]
        %v393 = vld [vmem:[#allocation6 + $0x50] sm:$0xff]
        %v394 = vld [vmem:[#allocation6 + $0x58] sm:$0xff]
        %v395 = vld [vmem:[#allocation6 + $0x60] sm:$0xff]
        %v396 = vld [vmem:[#allocation6 + $0x68] sm:$0xff]
        %v397 = vld [vmem:[#allocation6 + $0x70] sm:$0xff]
        %v398 = vld [vmem:[#allocation6 + $0x78] sm:$0xff]
        %399 = vmatprep.subr.mxu0 0.0
        %400 = vmatpush1.msra.mxu0 %v383
        %401 = vmatprep.subr.mxu0 0.0
        %402 = vmatpush1.msra.mxu0 %v384
        %403 = vmatprep.subr.mxu0 0.0
        %404 = vmatpush1.msra.mxu0 %v385
        %405 = vmatprep.subr.mxu0 0.0
        %406 = vmatpush1.msra.mxu0 %v386
        %407 = vmatprep.subr.mxu0 0.0
        %408 = vmatpush1.msra.mxu0 %v387
        %409 = vmatprep.subr.mxu0 0.0
        %410 = vmatpush1.msra.mxu0 %v388
        %411 = vmatprep.subr.mxu0 0.0
        %412 = vmatpush1.msra.mxu0 %v389
        %413 = vmatprep.subr.mxu0 0.0
        %414 = vmatpush1.msra.mxu0 %v390
        %415 = vmatprep.subr.mxu0 0.0
        %416 = vmatpush1.msra.mxu0 %v391
        %417 = vmatprep.subr.mxu0 0.0
        %418 = vmatpush1.msra.mxu0 %v392
        %419 = vmatprep.subr.mxu0 0.0
        %420 = vmatpush1.msra.mxu0 %v393
        %421 = vmatprep.subr.mxu0 0.0
        %422 = vmatpush1.msra.mxu0 %v394
        %423 = vmatprep.subr.mxu0 0.0
        %424 = vmatpush1.msra.mxu0 %v395
        %425 = vmatprep.subr.mxu0 0.0
        %426 = vmatpush1.msra.mxu0 %v396
        %427 = vmatprep.subr.mxu0 0.0
        %428 = vmatpush1.msra.mxu0 %v397
        %429 = vmatprep.subr.mxu0 0.0
        %430 = vmatpush1.msra.mxu0 %v398
        %431 = vmatprep.subr.mxu0 0.0
        %432 = vmatpush1.msra.mxu0 0.0
        %433 = vmatprep.subr.mxu0 0.0
        %434 = vmatpush1.msra.mxu0 0.0
        %435 = vmatprep.subr.mxu0 0.0
        %436 = vmatpush1.msra.mxu0 0.0
        %437 = vmatprep.subr.mxu0 0.0
        %438 = vmatpush1.msra.mxu0 0.0
        %439 = vmatprep.subr.mxu0 0.0
        %440 = vmatpush1.msra.mxu0 0.0
        %441 = vmatprep.subr.mxu0 0.0
        %442 = vmatpush1.msra.mxu0 0.0
        %443 = vmatprep.subr.mxu0 0.0
        %444 = vmatpush1.msra.mxu0 0.0
        %445 = vmatprep.subr.mxu0 0.0
        %446 = vmatpush1.msra.mxu0 0.0
        %447 = vmatprep.subr.mxu0 0.0
        %448 = vmatpush1.msra.mxu0 0.0
        %449 = vmatprep.subr.mxu0 0.0
        %450 = vmatpush1.msra.mxu0 0.0
        %451 = vmatprep.subr.mxu0 0.0
        %452 = vmatpush1.msra.mxu0 0.0
        %453 = vmatprep.subr.mxu0 0.0
        %454 = vmatpush1.msra.mxu0 0.0
        %455 = vmatprep.subr.mxu0 0.0
        %456 = vmatpush1.msra.mxu0 0.0
        %457 = vmatprep.subr.mxu0 0.0
        %458 = vmatpush1.msra.mxu0 0.0
        %459 = vmatprep.subr.mxu0 0.0
        %460 = vmatpush1.msra.mxu0 0.0
        %461 = vmatprep.subr.mxu0 0.0
        %462 = vmatpush1.msra.mxu0 0.0
        %463 = vmatprep.mubr.f32.mxu0 0.0
        %464 = vmatmul.mubr.f32.gmra.mrb[0].mxu0 %v377
        %v465 = vpop.f32.mrb[0].mxu0
        %v466 = vadd.f32 0.0, %v465
        %v467 = vpop.f32.mrb[0].mxu0
        %468 = vmatprep.mubr.f32.mxu0 0.0
        %469 = vmatmul.mubr.f32.gmra.mrb[0].mxu0 %v378
        %v470 = vpop.f32.mrb[0].mxu0
        %v471 = vadd.f32 0.0, %v470
        %v472 = vpop.f32.mrb[0].mxu0
        %473 = vmatprep.mubr.f32.mxu0 0.0
        %474 = vmatmul.mubr.f32.gmra.mrb[0].mxu0 %v379
        %v475 = vpop.f32.mrb[0].mxu0
        %v476 = vadd.f32 0.0, %v475
        %v477 = vpop.f32.mrb[0].mxu0
        %478 = vdwg.mxu0
        %v479 = vld [vmem:[#allocation7] sm:$0xff]
        %v480 = vld [vmem:[#allocation7 + $0x8] sm:$0xff]
        %v481 = vld [vmem:[#allocation7 + $0x10] sm:$0xff]
        %v482 = vld [vmem:[#allocation7 + $0x18] sm:$0xff]
        %v483 = vld [vmem:[#allocation7 + $0x20] sm:$0xff]
        %v484 = vld [vmem:[#allocation7 + $0x28] sm:$0xff]
        %v485 = vld [vmem:[#allocation7 + $0x30] sm:$0xff]
        %v486 = vld [vmem:[#allocation7 + $0x38] sm:$0xff]
        %v487 = vld [vmem:[#allocation7 + $0x40] sm:$0xff]
        %v488 = vld [vmem:[#allocation7 + $0x48] sm:$0xff]
        %v489 = vld [vmem:[#allocation7 + $0x50] sm:$0xff]
        %v490 = vld [vmem:[#allocation7 + $0x58] sm:$0xff]
        %v491 = vld [vmem:[#allocation7 + $0x60] sm:$0xff]
        %v492 = vld [vmem:[#allocation7 + $0x68] sm:$0xff]
        %v493 = vld [vmem:[#allocation7 + $0x70] sm:$0xff]
        %v494 = vld [vmem:[#allocation7 + $0x78] sm:$0xff]
        %495 = vmatprep.subr.mxu0 0.0
        %496 = vmatpush1.msra.mxu0 %v479
        %497 = vmatprep.subr.mxu0 0.0
        %498 = vmatpush1.msra.mxu0 %v480
        %499 = vmatprep.subr.mxu0 0.0
        %500 = vmatpush1.msra.mxu0 %v481
        %501 = vmatprep.subr.mxu0 0.0
        %502 = vmatpush1.msra.mxu0 %v482
        %503 = vmatprep.subr.mxu0 0.0
        %504 = vmatpush1.msra.mxu0 %v483
        %505 = vmatprep.subr.mxu0 0.0
        %506 = vmatpush1.msra.mxu0 %v484
        %507 = vmatprep.subr.mxu0 0.0
        %508 = vmatpush1.msra.mxu0 %v485
        %509 = vmatprep.subr.mxu0 0.0
        %510 = vmatpush1.msra.mxu0 %v486
        %511 = vmatprep.subr.mxu0 0.0
        %512 = vmatpush1.msra.mxu0 %v487
        %513 = vmatprep.subr.mxu0 0.0
        %514 = vmatpush1.msra.mxu0 %v488
        %515 = vmatprep.subr.mxu0 0.0
        %516 = vmatpush1.msra.mxu0 %v489
        %517 = vmatprep.subr.mxu0 0.0
        %518 = vmatpush1.msra.mxu0 %v490
        %519 = vmatprep.subr.mxu0 0.0
        %520 = vmatpush1.msra.mxu0 %v491
        %521 = vmatprep.subr.mxu0 0.0
        %522 = vmatpush1.msra.mxu0 %v492
        %523 = vmatprep.subr.mxu0 0.0
        %524 = vmatpush1.msra.mxu0 %v493
        %525 = vmatprep.subr.mxu0 0.0
        %526 = vmatpush1.msra.mxu0 %v494
        %527 = vmatprep.subr.mxu0 0.0
        %528 = vmatpush1.msra.mxu0 0.0
        %529 = vmatprep.subr.mxu0 0.0
        %530 = vmatpush1.msra.mxu0 0.0
        %531 = vmatprep.subr.mxu0 0.0
        %532 = vmatpush1.msra.mxu0 0.0
        %533 = vmatprep.subr.mxu0 0.0
        %534 = vmatpush1.msra.mxu0 0.0
        %535 = vmatprep.subr.mxu0 0.0
        %536 = vmatpush1.msra.mxu0 0.0
        %537 = vmatprep.subr.mxu0 0.0
        %538 = vmatpush1.msra.mxu0 0.0
        %539 = vmatprep.subr.mxu0 0.0
        %540 = vmatpush1.msra.mxu0 0.0
        %541 = vmatprep.subr.mxu0 0.0
        %542 = vmatpush1.msra.mxu0 0.0
        %543 = vmatprep.subr.mxu0 0.0
        %544 = vmatpush1.msra.mxu0 0.0
        %545 = vmatprep.subr.mxu0 0.0
        %546 = vmatpush1.msra.mxu0 0.0
        %547 = vmatprep.subr.mxu0 0.0
        %548 = vmatpush1.msra.mxu0 0.0
        %549 = vmatprep.subr.mxu0 0.0
        %550 = vmatpush1.msra.mxu0 0.0
        %551 = vmatprep.subr.mxu0 0.0
        %552 = vmatpush1.msra.mxu0 0.0
        %553 = vmatprep.subr.mxu0 0.0
        %554 = vmatpush1.msra.mxu0 0.0
        %555 = vmatprep.subr.mxu0 0.0
        %556 = vmatpush1.msra.mxu0 0.0
        %557 = vmatprep.subr.mxu0 0.0
        %558 = vmatpush1.msra.mxu0 0.0
        %559 = vmatprep.mubr.f32.mxu0 0.0
        %560 = vmatmul.mubr.f32.gmra.mrb[0].mxu0 %v377
        %v561 = vpop.f32.mrb[0].mxu0
        %v562 = vadd.f32 0.0, %v561
        %v563 = vpop.f32.mrb[0].mxu0
        %564 = vmatprep.mubr.f32.mxu0 0.0
        %565 = vmatmul.mubr.f32.gmra.mrb[0].mxu0 %v378
        %v566 = vpop.f32.mrb[0].mxu0
        %v567 = vadd.f32 0.0, %v566
        %v568 = vpop.f32.mrb[0].mxu0
        %569 = vmatprep.mubr.f32.mxu0 0.0
        %570 = vmatmul.mubr.f32.gmra.mrb[0].mxu0 %v379
        %v571 = vpop.f32.mrb[0].mxu0
        %v572 = vadd.f32 0.0, %v571
        %v573 = vpop.f32.mrb[0].mxu0
        %574 = vdwg.mxu0
        %vm575 = vcmask 523264
        %v577 = vsel %vm575, %v466, 0
        %v580 = vsel %vm575, %v471, 0
        %v583 = vsel %vm575, %v476, 0
        %v586 = vsel %vm575, %v562, 0
        %v589 = vsel %vm575, %v567, 0
        %v592 = vsel %vm575, %v572, 0
        %594 = vmatprep.subr.mxu0 0.0
        %595 = vmatpush1.xpose.msra.mxu0 %v586
        %596 = vmatprep.subr.mxu0 0.0
        %597 = vmatpush1.xpose.msra.mxu0 %v589
        %598 = vmatprep.subr.mxu0 0.0
        %599 = vmatpush1.xpose.msra.mxu0 %v592
        %600 = vmatprep.subr.mxu0 0.0
        %601 = vmatpush1.xpose.msra.mxu0 0.0
        %602 = vmatprep.subr.mxu0 0.0
        %603 = vmatpush1.xpose.msra.mxu0 0.0
        %604 = vmatprep.subr.mxu0 0.0
        %605 = vmatpush1.xpose.msra.mxu0 0.0
        %606 = vmatprep.subr.mxu0 0.0
        %607 = vmatpush1.xpose.msra.mxu0 0.0
        %608 = vmatprep.subr.mxu0 0.0
        %609 = vmatpush1.xpose.msra.mxu0 0.0
        %610 = vmatprep.subr.mxu0 0.0
        %611 = vmatpush1.xpose.msra.mxu0 0.0
        %612 = vmatprep.subr.mxu0 0.0
        %613 = vmatpush1.xpose.msra.mxu0 0.0
        %614 = vmatprep.subr.mxu0 0.0
        %615 = vmatpush1.xpose.msra.mxu0 0.0
        %616 = vmatprep.subr.mxu0 0.0
        %617 = vmatpush1.xpose.msra.mxu0 0.0
        %618 = vmatprep.subr.mxu0 0.0
        %619 = vmatpush1.xpose.msra.mxu0 0.0
        %620 = vmatprep.subr.mxu0 0.0
        %621 = vmatpush1.xpose.msra.mxu0 0.0
        %622 = vmatprep.subr.mxu0 0.0
        %623 = vmatpush1.xpose.msra.mxu0 0.0
        %624 = vmatprep.subr.mxu0 0.0
        %625 = vmatpush1.xpose.msra.mxu0 0.0
        %626 = vmatprep.subr.mxu0 0.0
        %627 = vmatpush1.xpose.msra.mxu0 0.0
        %628 = vmatprep.subr.mxu0 0.0
        %629 = vmatpush1.xpose.msra.mxu0 0.0
        %630 = vmatprep.subr.mxu0 0.0
        %631 = vmatpush1.xpose.msra.mxu0 0.0
        %632 = vmatprep.subr.mxu0 0.0
        %633 = vmatpush1.xpose.msra.mxu0 0.0
        %634 = vmatprep.subr.mxu0 0.0
        %635 = vmatpush1.xpose.msra.mxu0 0.0
        %636 = vmatprep.subr.mxu0 0.0
        %637 = vmatpush1.xpose.msra.mxu0 0.0
        %638 = vmatprep.subr.mxu0 0.0
        %639 = vmatpush1.xpose.msra.mxu0 0.0
        %640 = vmatprep.subr.mxu0 0.0
        %641 = vmatpush1.xpose.msra.mxu0 0.0
        %642 = vmatprep.subr.mxu0 0.0
        %643 = vmatpush1.xpose.msra.mxu0 0.0
        %644 = vmatprep.subr.mxu0 0.0
        %645 = vmatpush1.xpose.msra.mxu0 0.0
        %646 = vmatprep.subr.mxu0 0.0
        %647 = vmatpush1.xpose.msra.mxu0 0.0
        %648 = vmatprep.subr.mxu0 0.0
        %649 = vmatpush1.xpose.msra.mxu0 0.0
        %650 = vmatprep.subr.mxu0 0.0
        %651 = vmatpush1.xpose.msra.mxu0 0.0
        %652 = vmatprep.subr.mxu0 0.0
        %653 = vmatpush1.xpose.msra.mxu0 0.0
        %654 = vmatprep.subr.mxu0 0.0
        %655 = vmatpush1.xpose.msra.mxu0 0.0
        %656 = vmatprep.subr.mxu0 0.0
        %657 = vmatpush1.xpose.msra.mxu0 0.0
        %658 = vmatprep.mubr.f32.mxu0 0.0
        %659 = vmatmul.mubr.f32.gmra.mrb[0].mxu0 %v577
        %v660 = vpop.f32.mrb[0].mxu0
        %v661 = vadd.f32 0.0, %v660
        %v662 = vpop.f32.mrb[0].mxu0
        %663 = vmatprep.mubr.f32.mxu0 0.0
        %664 = vmatmul.mubr.f32.gmra.mrb[0].mxu0 %v580
        %v665 = vpop.f32.mrb[0].mxu0
        %v666 = vadd.f32 0.0, %v665
        %v667 = vpop.f32.mrb[0].mxu0
        %668 = vmatprep.mubr.f32.mxu0 0.0
        %669 = vmatmul.mubr.f32.gmra.mrb[0].mxu0 %v583
        %v670 = vpop.f32.mrb[0].mxu0
        %v671 = vadd.f32 0.0, %v670
        %v672 = vpop.f32.mrb[0].mxu0
        %673 = vdwg.mxu0
        %v674 = vmul.f32 %v661, 0.125
        %v675 = vmul.f32 %v666, 0.125
        %v676 = vmul.f32 %v671, 0.125
        %vm677 = vcmask 138240
        %v678 = vsel %vm677, %v674, -inf
        %679 = vmax.xlane.f32.xlu0 %v678
        %v680 = vpop.xlane.xlu0 %679
        %v681 = vsel %vm677, %v675, -inf
        %682 = vmax.xlane.f32.xlu0 %v681
        %v683 = vpop.xlane.xlu0 %682
        %vm684 = vcmask 131072
        %v685 = vsel %vm684, %v676, -inf
        %686 = vmax.xlane.f32.xlu0 %v685
        %v687 = vpop.xlane.xlu0 %686
        %v688 = vsub.f32 %v674, %v680
        %v689 = vsub.f32 %v675, %v683
        %v690 = vsub.f32 %v676, %v687
        %v691 = vmul.f32 %v688, 1.442695
        %v692 = vpow.pop %v691
        %v693 = vmul.f32 %v689, 1.442695
        %v694 = vpow.pop %v693
        %v695 = vmul.f32 %v690, 1.442695
        %v696 = vpow.pop %v695
        %v697 = vsel %vm677, %v692, 0.0
        %698 = vadd.xlane.f32.xlu0 %v697
        %v699 = vpop.xlane.xlu0 %698
        %v700 = vsel %vm677, %v694, 0.0
        %701 = vadd.xlane.f32.xlu0 %v700
        %v702 = vpop.xlane.xlu0 %701
        %v703 = vsel %vm684, %v696, 0.0
        %704 = vadd.xlane.f32.xlu0 %v703
        %v705 = vpop.xlane.xlu0 %704
        %v706 = vrcp.pop %v699
        %v707 = vmul.f32 %v692, %v706
        %v708 = vrcp.pop %v702
        %v709 = vmul.f32 %v694, %v708
        %v710 = vrcp.pop %v705
        %v711 = vmul.f32 %v696, %v710
        %712 = vst.msk [vmem:[%s319] sm:$0xff] %vm677, %v707
        %713 = vst.msk [vmem:[%s319 + $0x8] sm:$0xff] %vm677, %v709
        %714 = vst.msk [vmem:[%s319 + $0x10] sm:$0x1] %vm684, %v711
        %715 = vrot.lane.b32.xlu0 %v466, 64
        %v716 = vpop.permute.xlu0 %715
        %717 = vrot.lane.b32.xlu0 %v471, 64
        %v718 = vpop.permute.xlu0 %717
        %719 = vrot.lane.b32.xlu0 %v476, 64
        %v720 = vpop.permute.xlu0 %719
        %721 = vrot.lane.b32.xlu0 %v562, 64
        %v722 = vpop.permute.xlu0 %721
        %723 = vrot.lane.b32.xlu0 %v567, 64
        %v724 = vpop.permute.xlu0 %723
        %725 = vrot.lane.b32.xlu0 %v572, 64
        %v726 = vpop.permute.xlu0 %725
        %v727 = vsel %vm575, %v716, 0
        %v729 = vsel %vm575, %v718, 0
        %v731 = vsel %vm575, %v720, 0
        %v733 = vsel %vm575, %v722, 0
        %v735 = vsel %vm575, %v724, 0
        %v737 = vsel %vm575, %v726, 0
        %739 = vmatprep.subr.mxu0 0.0
        %740 = vmatpush1.xpose.msra.mxu0 %v733
        %741 = vmatprep.subr.mxu0 0.0
        %742 = vmatpush1.xpose.msra.mxu0 %v735
        %743 = vmatprep.subr.mxu0 0.0
        %744 = vmatpush1.xpose.msra.mxu0 %v737
        %745 = vmatprep.subr.mxu0 0.0
        %746 = vmatpush1.xpose.msra.mxu0 0.0
        %747 = vmatprep.subr.mxu0 0.0
        %748 = vmatpush1.xpose.msra.mxu0 0.0
        %749 = vmatprep.subr.mxu0 0.0
        %750 = vmatpush1.xpose.msra.mxu0 0.0
        %751 = vmatprep.subr.mxu0 0.0
        %752 = vmatpush1.xpose.msra.mxu0 0.0
        %753 = vmatprep.subr.mxu0 0.0
        %754 = vmatpush1.xpose.msra.mxu0 0.0
        %755 = vmatprep.subr.mxu0 0.0
        %756 = vmatpush1.xpose.msra.mxu0 0.0
        %757 = vmatprep.subr.mxu0 0.0
        %758 = vmatpush1.xpose.msra.mxu0 0.0
        %759 = vmatprep.subr.mxu0 0.0
        %760 = vmatpush1.xpose.msra.mxu0 0.0
        %761 = vmatprep.subr.mxu0 0.0
        %762 = vmatpush1.xpose.msra.mxu0 0.0
        %763 = vmatprep.subr.mxu0 0.0
        %764 = vmatpush1.xpose.msra.mxu0 0.0
        %765 = vmatprep.subr.mxu0 0.0
        %766 = vmatpush1.xpose.msra.mxu0 0.0
        %767 = vmatprep.subr.mxu0 0.0
        %768 = vmatpush1.xpose.msra.mxu0 0.0
        %769 = vmatprep.subr.mxu0 0.0
        %770 = vmatpush1.xpose.msra.mxu0 0.0
        %771 = vmatprep.subr.mxu0 0.0
        %772 = vmatpush1.xpose.msra.mxu0 0.0
        %773 = vmatprep.subr.mxu0 0.0
        %774 = vmatpush1.xpose.msra.mxu0 0.0
        %775 = vmatprep.subr.mxu0 0.0
        %776 = vmatpush1.xpose.msra.mxu0 0.0
        %777 = vmatprep.subr.mxu0 0.0
        %778 = vmatpush1.xpose.msra.mxu0 0.0
        %779 = vmatprep.subr.mxu0 0.0
        %780 = vmatpush1.xpose.msra.mxu0 0.0
        %781 = vmatprep.subr.mxu0 0.0
        %782 = vmatpush1.xpose.msra.mxu0 0.0
        %783 = vmatprep.subr.mxu0 0.0
        %784 = vmatpush1.xpose.msra.mxu0 0.0
        %785 = vmatprep.subr.mxu0 0.0
        %786 = vmatpush1.xpose.msra.mxu0 0.0
        %787 = vmatprep.subr.mxu0 0.0
        %788 = vmatpush1.xpose.msra.mxu0 0.0
        %789 = vmatprep.subr.mxu0 0.0
        %790 = vmatpush1.xpose.msra.mxu0 0.0
        %791 = vmatprep.subr.mxu0 0.0
        %792 = vmatpush1.xpose.msra.mxu0 0.0
        %793 = vmatprep.subr.mxu0 0.0
        %794 = vmatpush1.xpose.msra.mxu0 0.0
        %795 = vmatprep.subr.mxu0 0.0
        %796 = vmatpush1.xpose.msra.mxu0 0.0
        %797 = vmatprep.subr.mxu0 0.0
        %798 = vmatpush1.xpose.msra.mxu0 0.0
        %799 = vmatprep.subr.mxu0 0.0
        %800 = vmatpush1.xpose.msra.mxu0 0.0
        %801 = vmatprep.subr.mxu0 0.0
        %802 = vmatpush1.xpose.msra.mxu0 0.0
        %803 = vmatprep.mubr.f32.mxu0 0.0
        %804 = vmatmul.mubr.f32.gmra.mrb[0].mxu0 %v727
        %v805 = vpop.f32.mrb[0].mxu0
        %v806 = vadd.f32 0.0, %v805
        %v807 = vpop.f32.mrb[0].mxu0
        %808 = vmatprep.mubr.f32.mxu0 0.0
        %809 = vmatmul.mubr.f32.gmra.mrb[0].mxu0 %v729
        %v810 = vpop.f32.mrb[0].mxu0
        %v811 = vadd.f32 0.0, %v810
        %v812 = vpop.f32.mrb[0].mxu0
        %813 = vmatprep.mubr.f32.mxu0 0.0
        %814 = vmatmul.mubr.f32.gmra.mrb[0].mxu0 %v731
        %v815 = vpop.f32.mrb[0].mxu0
        %v816 = vadd.f32 0.0, %v815
        %v817 = vpop.f32.mrb[0].mxu0
        %818 = vdwg.mxu0
        %v819 = vmul.f32 %v806, 0.125
        %v820 = vmul.f32 %v811, 0.125
        %v821 = vmul.f32 %v816, 0.125
        %v822 = vsel %vm677, %v819, -inf
        %823 = vmax.xlane.f32.xlu0 %v822
        %v824 = vpop.xlane.xlu0 %823
        %v825 = vsel %vm677, %v820, -inf
        %826 = vmax.xlane.f32.xlu0 %v825
        %v827 = vpop.xlane.xlu0 %826
        %v828 = vsel %vm684, %v821, -inf
        %829 = vmax.xlane.f32.xlu0 %v828
        %v830 = vpop.xlane.xlu0 %829
        %v831 = vsub.f32 %v819, %v824
        %v832 = vsub.f32 %v820, %v827
        %v833 = vsub.f32 %v821, %v830
        %v834 = vmul.f32 %v831, 1.442695
        %v835 = vpow.pop %v834
        %v836 = vmul.f32 %v832, 1.442695
        %v837 = vpow.pop %v836
        %v838 = vmul.f32 %v833, 1.442695
        %v839 = vpow.pop %v838
        %v840 = vsel %vm677, %v835, 0.0
        %841 = vadd.xlane.f32.xlu0 %v840
        %v842 = vpop.xlane.xlu0 %841
        %v843 = vsel %vm677, %v837, 0.0
        %844 = vadd.xlane.f32.xlu0 %v843
        %v845 = vpop.xlane.xlu0 %844
        %v846 = vsel %vm684, %v839, 0.0
        %847 = vadd.xlane.f32.xlu0 %v846
        %v848 = vpop.xlane.xlu0 %847
        %v849 = vrcp.pop %v842
        %v850 = vmul.f32 %v835, %v849
        %v851 = vrcp.pop %v845
        %v852 = vmul.f32 %v837, %v851
        %v853 = vrcp.pop %v848
        %v854 = vmul.f32 %v839, %v853
        %s855 = scalar_lea.vmem %s319, 24
        %856 = vst.msk [vmem:[%s855] sm:$0xff] %vm677, %v850
        %857 = vst.msk [vmem:[%s855 + $0x8] sm:$0xff] %vm677, %v852
        %858 = vst.msk [vmem:[%s855 + $0x10] sm:$0x1] %vm684, %v854
        %p859 = scmp.lt.s32.totalorder %s21, 1
        %s860 = scalar_select %p859, %s21, 1
        %s861 = smul.addr %s860, 3
        %s862 = smul.addr %s861, 8
        %s863 = scalar_lea.vmem %s5, %s862
        %p864 = scmp.lt.s32.totalorder %s21, 1
        %s865 = scalar_select %p864, %s21, 1
        %s866 = smul.addr %s865, 6
        %s867 = smul.addr %s866, 8
        %s868 = scalar_lea.vmem %s6, %s867
        // Predicated region
        $region57: #{attention_pallas.2} parent=39 // pred_check
          %p869 = pneg %p149
        $region58: #{attention_pallas.2} parent=39 // pred_check_branch
          %871 = sbr.rel (%p869) target = $region60
        $region59: #{attention_pallas.2} parent=39 // pred_region
          _
        $region60: #{attention_pallas.2} parent=39 // pred_fallthru
          _
        // Predicated region
        $region61: #{attention_pallas.2} parent=39 // pred_check
          %p872 = pneg %p175
        $region62: #{attention_pallas.2} parent=39 // pred_check_branch
          %874 = sbr.rel (%p872) target = $region64
        $region63: #{attention_pallas.2} parent=39 // pred_region
          _
        $region64: #{attention_pallas.2} parent=39 // pred_fallthru
          _
      $region40: #{attention_pallas.2} parent=5 // pred_fallthru
        _
      %p875 = scmp.le.s32.totalorder 2, %s16
      // Predicated region
      $region65: #{attention_pallas.2} parent=5 // pred_check
        %p876 = pneg %p875
      $region66: #{attention_pallas.2} parent=5 // pred_check_branch
        %878 = sbr.rel (%p876) target = $region68
      $region67: #{attention_pallas.2} parent=5 // pred_region
        %s879 = ssub.s32 %s16, 2
        // Predicated region
        $region69: #{attention_pallas.2} parent=67 // pred_check
          %p880 = pneg %p155
        $region70: #{attention_pallas.2} parent=67 // pred_check_branch
          %882 = sbr.rel (%p880) target = $region72
        $region71: #{attention_pallas.2} parent=67 // pred_region
          %p883 = scmp.lt.s32.totalorder %s22, 1
          %s884 = scalar_select %p883, %s22, 1
          %s885 = smul.addr %s884, 3
          %s886 = smul.addr %s885, 8
          %s887 = scalar_lea.vmem %s5, %s886
        $region72: #{attention_pallas.2} parent=67 // pred_fallthru
          _
        // Predicated region
        $region73: #{attention_pallas.2} parent=67 // pred_check
          %p888 = pneg %p181
        $region74: #{attention_pallas.2} parent=67 // pred_check_branch
          %890 = sbr.rel (%p888) target = $region76
        $region75: #{attention_pallas.2} parent=67 // pred_region
          %p891 = scmp.lt.s32.totalorder %s22, 1
          %s892 = scalar_select %p891, %s22, 1
          %s893 = smul.addr %s892, 6
          %s894 = smul.addr %s893, 8
          %s895 = scalar_lea.vmem %s6, %s894
        $region76: #{attention_pallas.2} parent=67 // pred_fallthru
          _
      $region68: #{attention_pallas.2} parent=5 // pred_fallthru
        _
    $region6: #{attention_pallas.2} parent=1 // loop_footer
      %s20 = sadd.s32 1, %s16
    $region7: #{attention_pallas.2} parent=1 // loop_footer_branch
      %15 = sbr.rel target = $region3
    $region8: #{attention_pallas.2} parent=1 // loop_exit
      _
    %896 = vsyncpa [#allocation3], 1
    %s897 = scalar_lea.sflag [#allocation3], 1
    %898 = vsyncpa %s897, 1
    %899 = vsyncpa [#allocation5], 1
    %900 = vsyncpa [#allocation8], 1

// kernel: attention_pallas.3
$region0: #{attention_pallas.3}
  #allocation0 [shape = 'u32[]', space=smem, size = 0x4, offset = 0x4, fixed_abs, tag = 'smem constant byte address 0x4 - core index']
  #allocation1 [shape = 'u32[144,128]{1,0:T(1,128)}', space=vmem, size = 0x12000, scoped, tag = 'internal scratch']
  #allocation2 [shape = 'f32[2,128]{1,0:T(2,128)}', space=vmem, size = 0x400, scoped, tag = 'scratch operand']
  #allocation3 [shape = 's32[1]{0}', space=sflag, size = 0x4, scoped, tag = 'scoped memory for attention_pallas.3']
  #allocation4 [shape = 'u8[12288]{0}', space=smem, size = 0x3000, scoped, tag = 'prefetched SMEM operand 0']
  %s0 = inlined_call_operand.hbm [shape: s32[17,17], index: 0, kind: input, shape index: {}]
  %s1 = inlined_call_operand.vmem [shape: f32[17,2,128], index: 1, kind: input, shape index: {}]
  %s2 = inlined_call_operand.vmem [shape: f32[17,17,2,2], index: 2, kind: input, shape index: {}]
  %s3 = inlined_call_operand.hbm [shape: f32[52,128,128], index: 3, kind: input, shape index: {}]
  %s4 = inlined_call_operand.vmem [shape: f32[2,128], index: 4, kind: input, shape index: {}]
  %s5 = inlined_call_operand.hbm [shape: f32[128,128], index: 5, kind: input, shape index: {}]
  %s6 = inlined_call_operand.hbm [shape: f32[1,128], index: 6, kind: input, shape index: {}]
  %s7 = inlined_call_operand.hbm [shape: f32[17,2,128], index: 7, kind: output, shape index: {}]
  %s8 = sld [smem:[#allocation0]]
  $region77: #{attention_pallas.3} parent=0
    _
  %s10 = ssub.s32 1, %s8
  %s11 = scalar_select 0, %s10, %s8
  %13 = dma.hbm_to_smem %s0, 384, [#allocation4], [#allocation3]
  %14 = dma.done [#allocation3], 384
  %15 = sfence
  $region1: #{attention_pallas.3} parent=0
    #allocation5 [shape = 'u8[131072]{0}', space=vmem, size = 0x20000, scoped, tag = 'input window, operand 3']
    #allocation6 [shape = 's32[2]{0}', space=sflag, size = 0x8, scoped, tag = 'scoped memory for attention_pallas.3']
    #allocation7 [shape = 's32[2]{0}', space=sflag, size = 0x8, scoped, tag = 'scoped memory for attention_pallas.3']
    #allocation8 [shape = 'u8[65536]{0}', space=vmem, size = 0x10000, scoped, tag = 'input window, operand 5, single buffered']
    #allocation9 [shape = 's32[1]{0}', space=sflag, size = 0x4, scoped, tag = 'scoped memory for attention_pallas.3']
    #allocation10 [shape = 'u8[512]{0}', space=vmem, size = 0x400, scoped, tag = 'input window, operand 6, single buffered']
    #allocation11 [shape = 'u8[2048]{0}', space=vmem, size = 0x800, scoped, tag = 'output window, operand 0']
    %16 = vsyncpa [#allocation6], 0
    %s17 = scalar_lea.sflag [#allocation6], 1
    %18 = vsyncpa %s17, 0
    %19 = vsyncpa [#allocation9], 0
    %20 = vsyncpa [#allocation7], 0
    %s21 = scalar_lea.sflag [#allocation7], 1
    %22 = vsyncpa %s21, 0
    loop: start=0, step=1, limit=291
    $region2: #{attention_pallas.3} parent=1 // loop_pre_header
      _
    $region3: #{attention_pallas.3} parent=1 // loop_header
      %s24 = sphi 0, %s28
      %p25 = scmp.ge.s32.totalorder %s24, 291
      %s31 = sphi 0, %s43
      %s32 = sphi 0, %s39
      %s33 = sphi 0, %s31
      %s34 = sphi 0, %s32
      %s35 = sphi 0, %s33
      %s36 = sphi 0, %s34
      %s46 = sphi 0, %s48
      %s49 = sphi 0, %s46
      %s50 = sphi 0, %s49
      %s66 = sphi 0, %s50
      %s74 = sphi 0, %s76
      %s77 = sphi 0, %s74
      %s78 = sphi 0, %s77
      %s94 = sphi 0, %s78
      %s116 = sphi 0, %s118
      %s119 = sphi 0, %s116
      %s120 = sphi 0, %s119
      %s136 = sphi 0, %s120
      %s140 = sphi 0, %s140
      %s142 = sphi 0, %s140
      %s143 = sphi 0, %s142
      %s157 = sphi 0, %s143
      %s161 = sphi 0, %s161
      %s163 = sphi 0, %s161
      %s164 = sphi 0, %s163
      %s178 = sphi 0, %s164
      %s182 = sphi 0, %s182
      %s184 = sphi 0, %s182
      %s185 = sphi 0, %s184
      %s199 = sphi 0, %s185
      %s205 = sphi 0, %s207
      %s208 = sphi 0, %s205
      %s209 = sphi 0, %s208
      %s225 = sphi 0, %s209
    $region4: #{attention_pallas.3} parent=1 // loop_header_branch
      %27 = sbr.rel (%p25) target = $region8
    $region5: #{attention_pallas.3} parent=1 // loop_body
      %s29 = ssub.s32 %s24, 1
      %s30 = ssub.s32 %s24, 2
      %s37 = sadd.s32 1, %s32
      %p38 = scmp.ge.s32.totalorder %s37, 17
      %s39 = scalar_select %p38, 0, %s37
      %s40 = sadd.s32 1, %s31
      %s41 = scalar_select %p38, %s40, %s31
      %p42 = scmp.ge.s32.totalorder %s41, 17
      %s43 = scalar_select %p42, 0, %s41
      %s44 = ssub.s32 %s32, %s39
      %p45 = scmp.eq.s32.totalorder %s44, 0
      %s47 = sadd.s32 %s46, 1
      %s48 = scalar_select %p45, %s46, %s47
      %p51 = pneg %p45
      %p52 = scmp.eq.s32.totalorder %s24, 288
      %p53 = por %p51, %p52
      %p54 = scmp.ne.s32.totalorder %s46, %s49
      %p55 = scmp.eq.s32.totalorder %s24, 0
      %p56 = por %p54, %p55
      %p57 = scmp.ne.s32.totalorder %s46, %s49
      %p58 = scmp.eq.s32.totalorder %s29, 288
      %p59 = por %p57, %p58
      %p60 = scmp.ne.s32.totalorder %s49, %s50
      %p61 = scmp.eq.s32.totalorder %s29, 0
      %p62 = por %p60, %p61
      %p63 = scmp.ne.s32.totalorder %s49, %s50
      %p64 = scmp.eq.s32.totalorder %s30, 288
      %p65 = por %p63, %p64
      %p67 = scmp.ne.s32.totalorder %s50, %s66
      %p68 = scmp.eq.s32.totalorder %s30, 0
      %p69 = por %p67, %p68
      %s70 = ssub.s32 %s31, %s43
      %s71 = ssub.s32 %s32, %s39
      %s72 = sor.u32 %s70, %s71
      %p73 = scmp.eq.s32.totalorder %s72, 0
      %s75 = sadd.s32 %s74, 1
      %s76 = scalar_select %p73, %s74, %s75
      %p79 = pneg %p73
      %p80 = scmp.eq.s32.totalorder %s24, 288
      %p81 = por %p79, %p80
      %p82 = scmp.ne.s32.totalorder %s74, %s77
      %p83 = scmp.eq.s32.totalorder %s24, 0
      %p84 = por %p82, %p83
      %p85 = scmp.ne.s32.totalorder %s74, %s77
      %p86 = scmp.eq.s32.totalorder %s29, 288
      %p87 = por %p85, %p86
      %p88 = scmp.ne.s32.totalorder %s77, %s78
      %p89 = scmp.eq.s32.totalorder %s29, 0
      %p90 = por %p88, %p89
      %p91 = scmp.ne.s32.totalorder %s77, %s78
      %p92 = scmp.eq.s32.totalorder %s30, 288
      %p93 = por %p91, %p92
      %p95 = scmp.ne.s32.totalorder %s78, %s94
      %p96 = scmp.eq.s32.totalorder %s30, 0
      %p97 = por %p95, %p96
      %s98 = sshra.s32 %s32, 7
      %s99 = sand.u32 %s32, 127
      %s100 = sadd.s32 %s98, %s31
      %s101 = smul.u32 %s100, 128
      %s102 = sshra.s32 %s32, 7
      %s103 = sand.u32 %s32, 127
      %s104 = sadd.s32 %s101, %s103
      %s105 = sld [smem:[#allocation4 + %s104]]
      %s106 = sshra.s32 %s39, 7
      %s107 = sand.u32 %s39, 127
      %s108 = sadd.s32 %s106, %s43
      %s109 = smul.u32 %s108, 128
      %s110 = sshra.s32 %s39, 7
      %s111 = sand.u32 %s39, 127
      %s112 = sadd.s32 %s109, %s111
      %s113 = sld [smem:[#allocation4 + %s112]]
      %s114 = ssub.s32 %s105, %s113
      %p115 = scmp.eq.s32.totalorder %s114, 0
      %s117 = sadd.s32 %s116, 1
      %s118 = scalar_select %p115, %s116, %s117
      %p121 = pneg %p115
      %p122 = scmp.eq.s32.totalorder %s24, 288
      %p123 = por %p121, %p122
      %p124 = scmp.ne.s32.totalorder %s116, %s119
      %p125 = scmp.eq.s32.totalorder %s24, 0
      %p126 = por %p124, %p125
      %p127 = scmp.ne.s32.totalorder %s116, %s119
      %p128 = scmp.eq.s32.totalorder %s29, 288
      %p129 = por %p127, %p128
      %p130 = scmp.ne.s32.totalorder %s119, %s120
      %p131 = scmp.eq.s32.totalorder %s29, 0
      %p132 = por %p130, %p131
      %p133 = scmp.ne.s32.totalorder %s119, %s120
      %p134 = scmp.eq.s32.totalorder %s30, 288
      %p135 = por %p133, %p134
      %p137 = scmp.ne.s32.totalorder %s120, %s136
      %p138 = scmp.eq.s32.totalorder %s30, 0
      %p139 = por %p137, %p138
      %s141 = sadd.s32 %s140, 1
      %p144 = scmp.eq.s32.totalorder %s24, 288
      %p145 = scmp.ne.s32.totalorder %s140, %s142
      %p146 = scmp.eq.s32.totalorder %s24, 0
      %p147 = por %p145, %p146
      %p148 = scmp.ne.s32.totalorder %s140, %s142
      %p149 = scmp.eq.s32.totalorder %s29, 288
      %p150 = por %p148, %p149
      %p151 = scmp.ne.s32.totalorder %s142, %s143
      %p152 = scmp.eq.s32.totalorder %s29, 0
      %p153 = por %p151, %p152
      %p154 = scmp.ne.s32.totalorder %s142, %s143
      %p155 = scmp.eq.s32.totalorder %s30, 288
      %p156 = por %p154, %p155
      %p158 = scmp.ne.s32.totalorder %s143, %s157
      %p159 = scmp.eq.s32.totalorder %s30, 0
      %p160 = por %p158, %p159
      %s162 = sadd.s32 %s161, 1
      %p165 = scmp.eq.s32.totalorder %s24, 288
      %p166 = scmp.ne.s32.totalorder %s161, %s163
      %p167 = scmp.eq.s32.totalorder %s24, 0
      %p168 = por %p166, %p167
      %p169 = scmp.ne.s32.totalorder %s161, %s163
      %p170 = scmp.eq.s32.totalorder %s29, 288
      %p171 = por %p169, %p170
      %p172 = scmp.ne.s32.totalorder %s163, %s164
      %p173 = scmp.eq.s32.totalorder %s29, 0
      %p174 = por %p172, %p173
      %p175 = scmp.ne.s32.totalorder %s163, %s164
      %p176 = scmp.eq.s32.totalorder %s30, 288
      %p177 = por %p175, %p176
      %p179 = scmp.ne.s32.totalorder %s164, %s178
      %p180 = scmp.eq.s32.totalorder %s30, 0
      %p181 = por %p179, %p180
      %s183 = sadd.s32 %s182, 1
      %p186 = scmp.eq.s32.totalorder %s24, 288
      %p187 = scmp.ne.s32.totalorder %s182, %s184
      %p188 = scmp.eq.s32.totalorder %s24, 0
      %p189 = por %p187, %p188
      %p190 = scmp.ne.s32.totalorder %s182, %s184
      %p191 = scmp.eq.s32.totalorder %s29, 288
      %p192 = por %p190, %p191
      %p193 = scmp.ne.s32.totalorder %s184, %s185
      %p194 = scmp.eq.s32.totalorder %s29, 0
      %p195 = por %p193, %p194
      %p196 = scmp.ne.s32.totalorder %s184, %s185
      %p197 = scmp.eq.s32.totalorder %s30, 288
      %p198 = por %p196, %p197
      %p200 = scmp.ne.s32.totalorder %s185, %s199
      %p201 = scmp.eq.s32.totalorder %s30, 0
      %p202 = por %p200, %p201
      %s203 = ssub.s32 %s31, %s43
      %p204 = scmp.eq.s32.totalorder %s203, 0
      %s206 = sadd.s32 %s205, 1
      %s207 = scalar_select %p204, %s205, %s206
      %p210 = pneg %p204
      %p211 = scmp.eq.s32.totalorder %s24, 288
      %p212 = por %p210, %p211
      %p213 = scmp.ne.s32.totalorder %s205, %s208
      %p214 = scmp.eq.s32.totalorder %s24, 0
      %p215 = por %p213, %p214
      %p216 = scmp.ne.s32.totalorder %s205, %s208
      %p217 = scmp.eq.s32.totalorder %s29, 288
      %p218 = por %p216, %p217
      %p219 = scmp.ne.s32.totalorder %s208, %s209
      %p220 = scmp.eq.s32.totalorder %s29, 0
      %p221 = por %p219, %p220
      %p222 = scmp.ne.s32.totalorder %s208, %s209
      %p223 = scmp.eq.s32.totalorder %s30, 288
      %p224 = por %p222, %p223
      %p226 = scmp.ne.s32.totalorder %s209, %s225
      %p227 = scmp.eq.s32.totalorder %s30, 0
      %p228 = por %p226, %p227
      %p229 = scmp.le.s32.totalorder 1, %s24
      %p230 = scmp.lt.s32.totalorder %s24, 290
      %p231 = pnand %p229, %p230
      %p232 = pneg %p231
      // Predicated region
      $region9: #{attention_pallas.3} parent=5 // pred_check
        _
      $region10: #{attention_pallas.3} parent=5 // pred_check_branch
        %234 = sbr.rel (%p231) target = $region12
      $region11: #{attention_pallas.3} parent=5 // pred_region
        %s235 = ssub.s32 %s24, 1
        // Predicated region
        $region13: #{attention_pallas.3} parent=11 // pred_check
          %p236 = pneg %p153
        $region14: #{attention_pallas.3} parent=11 // pred_check_branch
          %238 = sbr.rel (%p236) target = $region16
        $region15: #{attention_pallas.3} parent=11 // pred_region
          _
        $region16: #{attention_pallas.3} parent=11 // pred_fallthru
          _
        // Predicated region
        $region17: #{attention_pallas.3} parent=11 // pred_check
          %p239 = pneg %p174
        $region18: #{attention_pallas.3} parent=11 // pred_check_branch
          %241 = sbr.rel (%p239) target = $region20
        $region19: #{attention_pallas.3} parent=11 // pred_region
          %s243 = ssub.s32 2048, 2048
          %244 = vsyncadd [#allocation9], %s243
          %s245 = sshll.u32 [#allocation8], 4
          %s246 = int_to_ptr.vmem [resolvable:$true] %s245
          %251 = dma.hbm_to_vmem [thread:$0]  %s5, 2048, %s246, [#allocation9], 128, 128, 8
        $region20: #{attention_pallas.3} parent=11 // pred_fallthru
          _
        // Predicated region
        $region21: #{attention_pallas.3} parent=11 // pred_check
          %p252 = pneg %p195
        $region22: #{attention_pallas.3} parent=11 // pred_check_branch
          %254 = sbr.rel (%p252) target = $region24
        $region23: #{attention_pallas.3} parent=11 // pred_region
          %s256 = ssub.s32 16, 16
          %257 = vsyncadd [#allocation9], %s256
          %s259 = sshll.u32 [#allocation10], 4
          %s260 = int_to_ptr.vmem [resolvable:$true] %s259
          %262 = dma.hbm_to_vmem [thread:$0]  %s6, 16, %s260, [#allocation9]
        $region24: #{attention_pallas.3} parent=11 // pred_fallthru
          _
      $region12: #{attention_pallas.3} parent=5 // pred_fallthru
        _
      %p263 = scmp.lt.s32.totalorder %s24, 289
      // Predicated region
      $region25: #{attention_pallas.3} parent=5 // pred_check
        %p264 = pneg %p263
      $region26: #{attention_pallas.3} parent=5 // pred_check_branch
        %266 = sbr.rel (%p264) target = $region28
      $region27: #{attention_pallas.3} parent=5 // pred_region
        // Predicated region
        $region29: #{attention_pallas.3} parent=27 // pred_check
          %p267 = pneg %p56
        $region30: #{attention_pallas.3} parent=27 // pred_check_branch
          %269 = sbr.rel (%p267) target = $region32
        $region31: #{attention_pallas.3} parent=27 // pred_region
          %p270 = scmp.lt.s32.totalorder %s32, 16
          %s271 = scalar_select %p270, %s32, 16
          %s272 = smul.addr %s271, 2
          %s273 = scalar_lea.vmem %s1, %s272
        $region32: #{attention_pallas.3} parent=27 // pred_fallthru
          _
        // Predicated region
        $region33: #{attention_pallas.3} parent=27 // pred_check
          %p274 = pneg %p84
        $region34: #{attention_pallas.3} parent=27 // pred_check_branch
          %276 = sbr.rel (%p274) target = $region36
        $region35: #{attention_pallas.3} parent=27 // pred_region
          %p277 = scmp.lt.s32.totalorder %s31, 16
          %s278 = scalar_select %p277, %s31, 16
          %p279 = scmp.lt.s32.totalorder %s32, 16
          %s280 = scalar_select %p279, %s32, 16
          %s281 = smul.addr %s278, 17
          %s282 = sadd.s32 %s280, %s281
          %s283 = smul.addr %s282, 2
          %s284 = scalar_lea.vmem %s2, %s283
        $region36: #{attention_pallas.3} parent=27 // pred_fallthru
          _
        // Predicated region
        $region37: #{attention_pallas.3} parent=27 // pred_check
          %p285 = pneg %p126
        $region38: #{attention_pallas.3} parent=27 // pred_check_branch
          %287 = sbr.rel (%p285) target = $region40
        $region39: #{attention_pallas.3} parent=27 // pred_region
          %s288 = sand.u32 %s116, 1
          %s289 = scalar_lea.sflag [#allocation6], %s288
          %s290 = sand.u32 %s116, 1
          %s291 = smul.addr %s290, 128
          %s292 = scalar_lea.vmem [#allocation5], %s291
          %s293 = sshra.s32 %s32, 7
          %s294 = sand.u32 %s32, 127
          %s295 = sadd.s32 %s293, %s31
          %s296 = smul.u32 %s295, 128
          %s297 = sshra.s32 %s32, 7
          %s298 = sand.u32 %s32, 127
          %s299 = sadd.s32 %s296, %s298
          %s300 = sld [smem:[#allocation4 + %s299]]
          %s302 = ssub.s32 2048, 2048
          %303 = vsyncadd %s289, %s302
          %s304 = smul.addr %s300, 16
          %s305 = smul.addr %s304, 128
          %s306 = scalar_lea.hbm %s3, %s305
          %s307 = sshll.u32 %s292, 4
          %s308 = int_to_ptr.vmem [resolvable:$true] %s307
          %313 = dma.hbm_to_vmem [thread:$0]  %s306, 2048, %s308, %s289, 128, 128, 8
        $region40: #{attention_pallas.3} parent=27 // pred_fallthru
          _
      $region28: #{attention_pallas.3} parent=5 // pred_fallthru
        _
      %p314 = scmp.le.s32.totalorder 1, %s24
      %p315 = scmp.lt.s32.totalorder %s24, 290
      %p316 = pnand %p314, %p315
      %p317 = pneg %p316
      // Predicated region
      $region41: #{attention_pallas.3} parent=5 // pred_check
        _
      $region42: #{attention_pallas.3} parent=5 // pred_check_branch
        %319 = sbr.rel (%p316) target = $region44
      $region43: #{attention_pallas.3} parent=5 // pred_region
        %s320 = ssub.s32 %s24, 1
        %s321 = sand.u32 %s119, 1
        %s322 = scalar_lea.sflag [#allocation6], %s321
        %s323 = sand.u32 %s119, 1
        %s324 = smul.addr %s323, 128
        %s325 = scalar_lea.vmem [#allocation5], %s324
        // Predicated region
        $region45: #{attention_pallas.3} parent=43 // pred_check
          %p326 = pneg %p132
        $region46: #{attention_pallas.3} parent=43 // pred_check_branch
          %328 = sbr.rel (%p326) target = $region48
        $region47: #{attention_pallas.3} parent=43 // pred_region
          %329 = dma.done %s322, 2048
        $region48: #{attention_pallas.3} parent=43 // pred_fallthru
          _
        // Predicated region
        $region49: #{attention_pallas.3} parent=43 // pred_check
          %p330 = pneg %p174
        $region50: #{attention_pallas.3} parent=43 // pred_check_branch
          %332 = sbr.rel (%p330) target = $region52
        $region51: #{attention_pallas.3} parent=43 // pred_region
          %333 = dma.done [#allocation9], 2048
        $region52: #{attention_pallas.3} parent=43 // pred_fallthru
          _
        // Predicated region
        $region53: #{attention_pallas.3} parent=43 // pred_check
          %p334 = pneg %p195
        $region54: #{attention_pallas.3} parent=43 // pred_check_branch
          %336 = sbr.rel (%p334) target = $region56
        $region55: #{attention_pallas.3} parent=43 // pred_region
          %337 = dma.done [#allocation9], 16
        $region56: #{attention_pallas.3} parent=43 // pred_fallthru
          _
        %p338 = scmp.lt.s32.totalorder %s34, 16
        %s339 = scalar_select %p338, %s34, 16
        %s340 = smul.addr %s339, 2
        %s341 = scalar_lea.vmem %s1, %s340
        %p342 = pneg %p62
        %p343 = pneg %p59
        %p344 = scmp.lt.s32.totalorder %s33, 16
        %s345 = scalar_select %p344, %s33, 16
        %p346 = scmp.lt.s32.totalorder %s34, 16
        %s347 = scalar_select %p346, %s34, 16
        %s348 = smul.addr %s345, 17
        %s349 = sadd.s32 %s347, %s348
        %s350 = smul.addr %s349, 2
        %s351 = scalar_lea.vmem %s2, %s350
        %p352 = pneg %p90
        %p353 = pneg %p87
        %s354 = sand.u32 %s119, 1
        %s355 = scalar_lea.sflag [#allocation6], %s354
        %s356 = sand.u32 %s119, 1
        %s357 = smul.addr %s356, 128
        %s358 = scalar_lea.vmem [#allocation5], %s357
        %p359 = pneg %p132
        %p360 = pneg %p129
        %p361 = pneg %p153
        %p362 = pneg %p150
        %p363 = pneg %p174
        %p364 = pneg %p171
        %p365 = pneg %p195
        %p366 = pneg %p192
        %p367 = pneg %p221
        %p368 = pneg %p218
        %s369 = sand.u32 %s208, 1
        %s370 = scalar_lea.sflag [#allocation7], %s369
        %s371 = sand.u32 %s208, 1
        %s372 = smul.addr %s371, 2
        %s373 = scalar_lea.vmem [#allocation11], %s372
        %p374 = scmp.lt.s32.totalorder %s34, 16
        %s375 = scalar_select %p374, %s34, 16
        %s376 = smul.addr %s375, 2
        %s377 = scalar_lea.vmem %s1, %s376
        %p378 = scmp.lt.s32.totalorder %s33, 16
        %s379 = scalar_select %p378, %s33, 16
        %p380 = scmp.lt.s32.totalorder %s34, 16
        %s381 = scalar_select %p380, %s34, 16
        %s382 = smul.addr %s379, 17
        %s383 = sadd.s32 %s381, %s382
        %s384 = smul.addr %s383, 2
        %s385 = scalar_lea.vmem %s2, %s384
        %s386 = sshra.s32 %s34, 7
        %s387 = sand.u32 %s34, 127
        %s388 = sadd.s32 %s386, %s33
        %s389 = smul.u32 %s388, 128
        %s390 = sshra.s32 %s34, 7
        %s391 = sand.u32 %s34, 127
        %s392 = sadd.s32 %s389, %s391
        %s393 = sld [smem:[#allocation4 + %s392]]
        %p394 = scmp.eq.s32.totalorder %s34, 0
        // Predicated region
        $region57: #{attention_pallas.3} parent=43 // pred_check
          %p395 = pneg %p394
        $region58: #{attention_pallas.3} parent=43 // pred_check_branch
          %397 = sbr.rel (%p395) target = $region60
        $region59: #{attention_pallas.3} parent=43 // pred_region
          %398 = vst [vmem:[#allocation2] sm:$0x3] 0.0
        $region60: #{attention_pallas.3} parent=43 // pred_fallthru
          _
        %v399 = vld [vmem:[%s377] sm:$0x3]
        %v400 = vld [vmem:[%s325] sm:$0xff]
        %v401 = vld [vmem:[%s325 + $0x8] sm:$0xff]
        %v402 = vld [vmem:[%s325 + $0x10] sm:$0xff]
        %v403 = vld [vmem:[%s325 + $0x18] sm:$0xff]
        %v404 = vld [vmem:[%s325 + $0x20] sm:$0xff]
        %v405 = vld [vmem:[%s325 + $0x28] sm:$0xff]
        %v406 = vld [vmem:[%s325 + $0x30] sm:$0xff]
        %v407 = vld [vmem:[%s325 + $0x38] sm:$0xff]
        %v408 = vld [vmem:[%s325 + $0x40] sm:$0xff]
        %v409 = vld [vmem:[%s325 + $0x48] sm:$0xff]
        %v410 = vld [vmem:[%s325 + $0x50] sm:$0xff]
        %v411 = vld [vmem:[%s325 + $0x58] sm:$0xff]
        %v412 = vld [vmem:[%s325 + $0x60] sm:$0xff]
        %v413 = vld [vmem:[%s325 + $0x68] sm:$0xff]
        %v414 = vld [vmem:[%s325 + $0x70] sm:$0xff]
        %v415 = vld [vmem:[%s325 + $0x78] sm:$0xff]
        %416 = vmatprep.subr.mxu0 0.0
        %417 = vmatpush1.msra.mxu0 %v400
        %418 = vmatprep.subr.mxu0 0.0
        %419 = vmatpush1.msra.mxu0 %v401
        %420 = vmatprep.subr.mxu0 0.0
        %421 = vmatpush1.msra.mxu0 %v402
        %422 = vmatprep.subr.mxu0 0.0
        %423 = vmatpush1.msra.mxu0 %v403
        %424 = vmatprep.subr.mxu0 0.0
        %425 = vmatpush1.msra.mxu0 %v404
        %426 = vmatprep.subr.mxu0 0.0
        %427 = vmatpush1.msra.mxu0 %v405
        %428 = vmatprep.subr.mxu0 0.0
        %429 = vmatpush1.msra.mxu0 %v406
        %430 = vmatprep.subr.mxu0 0.0
        %431 = vmatpush1.msra.mxu0 %v407
        %432 = vmatprep.subr.mxu0 0.0
        %433 = vmatpush1.msra.mxu0 %v408
        %434 = vmatprep.subr.mxu0 0.0
        %435 = vmatpush1.msra.mxu0 %v409
        %436 = vmatprep.subr.mxu0 0.0
        %437 = vmatpush1.msra.mxu0 %v410
        %438 = vmatprep.subr.mxu0 0.0
        %439 = vmatpush1.msra.mxu0 %v411
        %440 = vmatprep.subr.mxu0 0.0
        %441 = vmatpush1.msra.mxu0 %v412
        %442 = vmatprep.subr.mxu0 0.0
        %443 = vmatpush1.msra.mxu0 %v413
        %444 = vmatprep.subr.mxu0 0.0
        %445 = vmatpush1.msra.mxu0 %v414
        %446 = vmatprep.subr.mxu0 0.0
        %447 = vmatpush1.msra.mxu0 %v415
        %448 = vmatprep.subr.mxu0 0.0
        %449 = vmatpush1.msra.mxu0 0.0
        %450 = vmatprep.subr.mxu0 0.0
        %451 = vmatpush1.msra.mxu0 0.0
        %452 = vmatprep.subr.mxu0 0.0
        %453 = vmatpush1.msra.mxu0 0.0
        %454 = vmatprep.subr.mxu0 0.0
        %455 = vmatpush1.msra.mxu0 0.0
        %456 = vmatprep.subr.mxu0 0.0
        %457 = vmatpush1.msra.mxu0 0.0
        %458 = vmatprep.subr.mxu0 0.0
        %459 = vmatpush1.msra.mxu0 0.0
        %460 = vmatprep.subr.mxu0 0.0
        %461 = vmatpush1.msra.mxu0 0.0
        %462 = vmatprep.subr.mxu0 0.0
        %463 = vmatpush1.msra.mxu0 0.0
        %464 = vmatprep.subr.mxu0 0.0
        %465 = vmatpush1.msra.mxu0 0.0
        %466 = vmatprep.subr.mxu0 0.0
        %467 = vmatpush1.msra.mxu0 0.0
        %468 = vmatprep.subr.mxu0 0.0
        %469 = vmatpush1.msra.mxu0 0.0
        %470 = vmatprep.subr.mxu0 0.0
        %471 = vmatpush1.msra.mxu0 0.0
        %472 = vmatprep.subr.mxu0 0.0
        %473 = vmatpush1.msra.mxu0 0.0
        %474 = vmatprep.subr.mxu0 0.0
        %475 = vmatpush1.msra.mxu0 0.0
        %476 = vmatprep.subr.mxu0 0.0
        %477 = vmatpush1.msra.mxu0 0.0
        %478 = vmatprep.subr.mxu0 0.0
        %479 = vmatpush1.msra.mxu0 0.0
        %480 = vmatprep.mubr.f32.mxu0 0.0
        %481 = vmatmul.mubr.f32.gmra.mrb[0].mxu0 %v399
        %v482 = vpop.f32.mrb[0].mxu0
        %v483 = vadd.f32 0.0, %v482
        %v484 = vpop.f32.mrb[0].mxu0
        %485 = vdwg.mxu0
        %v486 = vld [vmem:[%s385] sm:$0x3]
        %v487 = vld [vmem:[%s4] sm:$0x3]
        %vm488 = vcmask 15360
        %v490 = vsel %vm488, %v486, 0
        %vm492 = vcmask 1041408
        %v494 = vsel %vm492, %v487, 0
        %496 = vmatprep.subr.mxu0 0.0
        %497 = vmatpush1.msra.mxu0 %v494
        %498 = vmatprep.subr.mxu0 0.0
        %499 = vmatpush1.msra.mxu0 0.0
        %500 = vmatprep.subr.mxu0 0.0
        %501 = vmatpush1.msra.mxu0 0.0
        %502 = vmatprep.subr.mxu0 0.0
        %503 = vmatpush1.msra.mxu0 0.0
        %504 = vmatprep.subr.mxu0 0.0
        %505 = vmatpush1.msra.mxu0 0.0
        %506 = vmatprep.subr.mxu0 0.0
        %507 = vmatpush1.msra.mxu0 0.0
        %508 = vmatprep.subr.mxu0 0.0
        %509 = vmatpush1.msra.mxu0 0.0
        %510 = vmatprep.subr.mxu0 0.0
        %511 = vmatpush1.msra.mxu0 0.0
        %512 = vmatprep.subr.mxu0 0.0
        %513 = vmatpush1.msra.mxu0 0.0
        %514 = vmatprep.subr.mxu0 0.0
        %515 = vmatpush1.msra.mxu0 0.0
        %516 = vmatprep.subr.mxu0 0.0
        %517 = vmatpush1.msra.mxu0 0.0
        %518 = vmatprep.subr.mxu0 0.0
        %519 = vmatpush1.msra.mxu0 0.0
        %520 = vmatprep.subr.mxu0 0.0
        %521 = vmatpush1.msra.mxu0 0.0
        %522 = vmatprep.subr.mxu0 0.0
        %523 = vmatpush1.msra.mxu0 0.0
        %524 = vmatprep.subr.mxu0 0.0
        %525 = vmatpush1.msra.mxu0 0.0
        %526 = vmatprep.subr.mxu0 0.0
        %527 = vmatpush1.msra.mxu0 0.0
        %528 = vmatprep.subr.mxu0 0.0
        %529 = vmatpush1.msra.mxu0 0.0
        %530 = vmatprep.subr.mxu0 0.0
        %531 = vmatpush1.msra.mxu0 0.0
        %532 = vmatprep.subr.mxu0 0.0
        %533 = vmatpush1.msra.mxu0 0.0
        %534 = vmatprep.subr.mxu0 0.0
        %535 = vmatpush1.msra.mxu0 0.0
        %536 = vmatprep.subr.mxu0 0.0
        %537 = vmatpush1.msra.mxu0 0.0
        %538 = vmatprep.subr.mxu0 0.0
        %539 = vmatpush1.msra.mxu0 0.0
        %540 = vmatprep.subr.mxu0 0.0
        %541 = vmatpush1.msra.mxu0 0.0
        %542 = vmatprep.subr.mxu0 0.0
        %543 = vmatpush1.msra.mxu0 0.0
        %544 = vmatprep.subr.mxu0 0.0
        %545 = vmatpush1.msra.mxu0 0.0
        %546 = vmatprep.subr.mxu0 0.0
        %547 = vmatpush1.msra.mxu0 0.0
        %548 = vmatprep.subr.mxu0 0.0
        %549 = vmatpush1.msra.mxu0 0.0
        %550 = vmatprep.subr.mxu0 0.0
        %551 = vmatpush1.msra.mxu0 0.0
        %552 = vmatprep.subr.mxu0 0.0
        %553 = vmatpush1.msra.mxu0 0.0
        %554 = vmatprep.subr.mxu0 0.0
        %555 = vmatpush1.msra.mxu0 0.0
        %556 = vmatprep.subr.mxu0 0.0
        %557 = vmatpush1.msra.mxu0 0.0
        %558 = vmatprep.subr.mxu0 0.0
        %559 = vmatpush1.msra.mxu0 0.0
        %560 = vmatprep.mubr.f32.mxu0 0.0
        %561 = vmatmul.mubr.f32.gmra.mrb[0].mxu0 %v490
        %v562 = vpop.f32.mrb[0].mxu0
        %v563 = vadd.f32 0.0, %v562
        %v564 = vpop.f32.mrb[0].mxu0
        %565 = vdwg.mxu0
        %v566 = vld [vmem:[#allocation2] sm:$0x3]
        %v567 = vmul.f32 %v563, %v483
        %v568 = vadd.f32 %v566, %v567
        %569 = vst [vmem:[#allocation2] sm:$0x3] %v568
        %p570 = scmp.eq.s32.totalorder %s34, 16
        // Predicated region
        $region61: #{attention_pallas.3} parent=43 // pred_check
          %p571 = pneg %p570
        $region62: #{attention_pallas.3} parent=43 // pred_check_branch
          %573 = sbr.rel (%p571) target = $region64
        $region63: #{attention_pallas.3} parent=43 // pred_region
          %v574 = vld [vmem:[#allocation2] sm:$0x3]
          %v575 = vld [vmem:[#allocation8] sm:$0xff]
          %v576 = vld [vmem:[#allocation8 + $0x8] sm:$0xff]
          %v577 = vld [vmem:[#allocation8 + $0x10] sm:$0xff]
          %v578 = vld [vmem:[#allocation8 + $0x18] sm:$0xff]
          %v579 = vld [vmem:[#allocation8 + $0x20] sm:$0xff]
          %v580 = vld [vmem:[#allocation8 + $0x28] sm:$0xff]
          %v581 = vld [vmem:[#allocation8 + $0x30] sm:$0xff]
          %v582 = vld [vmem:[#allocation8 + $0x38] sm:$0xff]
          %v583 = vld [vmem:[#allocation8 + $0x40] sm:$0xff]
          %v584 = vld [vmem:[#allocation8 + $0x48] sm:$0xff]
          %v585 = vld [vmem:[#allocation8 + $0x50] sm:$0xff]
          %v586 = vld [vmem:[#allocation8 + $0x58] sm:$0xff]
          %v587 = vld [vmem:[#allocation8 + $0x60] sm:$0xff]
          %v588 = vld [vmem:[#allocation8 + $0x68] sm:$0xff]
          %v589 = vld [vmem:[#allocation8 + $0x70] sm:$0xff]
          %v590 = vld [vmem:[#allocation8 + $0x78] sm:$0xff]
          %v591 = vld [vmem:[#allocation10] sm:$0x1]
          %v593 = vlaneseq
          %v594 = vshrl.u32 %v593, 7
          %v595 = vsub.s32 0, %v594
          %v596 = vrot.slane %v591, %v595
          %598 = vmatprep.subr.mxu0 0.0
          %599 = vmatpush1.msra.mxu0 %v575
          %600 = vmatprep.subr.mxu0 0.0
          %601 = vmatpush1.msra.mxu0 %v576
          %602 = vmatprep.subr.mxu0 0.0
          %603 = vmatpush1.msra.mxu0 %v577
          %604 = vmatprep.subr.mxu0 0.0
          %605 = vmatpush1.msra.mxu0 %v578
          %606 = vmatprep.subr.mxu0 0.0
          %607 = vmatpush1.msra.mxu0 %v579
          %608 = vmatprep.subr.mxu0 0.0
          %609 = vmatpush1.msra.mxu0 %v580
          %610 = vmatprep.subr.mxu0 0.0
          %611 = vmatpush1.msra.mxu0 %v581
          %612 = vmatprep.subr.mxu0 0.0
          %613 = vmatpush1.msra.mxu0 %v582
          %614 = vmatprep.subr.mxu0 0.0
          %615 = vmatpush1.msra.mxu0 %v583
          %616 = vmatprep.subr.mxu0 0.0
          %617 = vmatpush1.msra.mxu0 %v584
          %618 = vmatprep.subr.mxu0 0.0
          %619 = vmatpush1.msra.mxu0 %v585
          %620 = vmatprep.subr.mxu0 0.0
          %621 = vmatpush1.msra.mxu0 %v586
          %622 = vmatprep.subr.mxu0 0.0
          %623 = vmatpush1.msra.mxu0 %v587
          %624 = vmatprep.subr.mxu0 0.0
          %625 = vmatpush1.msra.mxu0 %v588
          %626 = vmatprep.subr.mxu0 0.0
          %627 = vmatpush1.msra.mxu0 %v589
          %628 = vmatprep.subr.mxu0 0.0
          %629 = vmatpush1.msra.mxu0 %v590
          %630 = vmatprep.subr.mxu0 0.0
          %631 = vmatpush1.msra.mxu0 0.0
          %632 = vmatprep.subr.mxu0 0.0
          %633 = vmatpush1.msra.mxu0 0.0
          %634 = vmatprep.subr.mxu0 0.0
          %635 = vmatpush1.msra.mxu0 0.0
          %636 = vmatprep.subr.mxu0 0.0
          %637 = vmatpush1.msra.mxu0 0.0
          %638 = vmatprep.subr.mxu0 0.0
          %639 = vmatpush1.msra.mxu0 0.0
          %640 = vmatprep.subr.mxu0 0.0
          %641 = vmatpush1.msra.mxu0 0.0
          %642 = vmatprep.subr.mxu0 0.0
          %643 = vmatpush1.msra.mxu0 0.0
          %644 = vmatprep.subr.mxu0 0.0
          %645 = vmatpush1.msra.mxu0 0.0
          %646 = vmatprep.subr.mxu0 0.0
          %647 = vmatpush1.msra.mxu0 0.0
          %648 = vmatprep.subr.mxu0 0.0
          %649 = vmatpush1.msra.mxu0 0.0
          %650 = vmatprep.subr.mxu0 0.0
          %651 = vmatpush1.msra.mxu0 0.0
          %652 = vmatprep.subr.mxu0 0.0
          %653 = vmatpush1.msra.mxu0 0.0
          %654 = vmatprep.subr.mxu0 0.0
          %655 = vmatpush1.msra.mxu0 0.0
          %656 = vmatprep.subr.mxu0 0.0
          %657 = vmatpush1.msra.mxu0 0.0
          %658 = vmatprep.subr.mxu0 0.0
          %659 = vmatpush1.msra.mxu0 0.0
          %660 = vmatprep.subr.mxu0 0.0
          %661 = vmatpush1.msra.mxu0 0.0
          %662 = vmatprep.mubr.f32.mxu0 0.0
          %663 = vmatmul.mubr.f32.gmra.mrb[0].mxu0 %v574
          %v664 = vpop.f32.mrb[0].mxu0
          %v665 = vadd.f32 %v596, %v664
          %v666 = vpop.f32.mrb[0].mxu0
          %667 = vdwg.mxu0
          %668 = vst [vmem:[%s373] sm:$0x3] %v665
        $region64: #{attention_pallas.3} parent=43 // pred_fallthru
          _
        %s669 = sand.u32 %s208, 1
        %s670 = scalar_lea.sflag [#allocation7], %s669
        %s671 = sand.u32 %s208, 1
        %s672 = smul.addr %s671, 2
        %s673 = scalar_lea.vmem [#allocation11], %s672
        // Predicated region
        $region65: #{attention_pallas.3} parent=43 // pred_check
          %p674 = pneg %p218
        $region66: #{attention_pallas.3} parent=43 // pred_check_branch
          %676 = sbr.rel (%p674) target = $region68
        $region67: #{attention_pallas.3} parent=43 // pred_region
          %s678 = ssub.s32 32, 32
          %679 = vsyncadd %s670, %s678
          %s680 = smul.addr %s33, 32
          %s681 = scalar_lea.hbm %s7, %s680
          %s683 = sshll.u32 %s673, 4
          %s684 = int_to_ptr.vmem [resolvable:$true] %s683
          %686 = dma.vmem_to_hbm [thread:$0]  %s684, 32, %s681, %s670
        $region68: #{attention_pallas.3} parent=43 // pred_fallthru
          _
      $region44: #{attention_pallas.3} parent=5 // pred_fallthru
        _
      %p687 = scmp.le.s32.totalorder 2, %s24
      // Predicated region
      $region69: #{attention_pallas.3} parent=5 // pred_check
        %p688 = pneg %p687
      $region70: #{attention_pallas.3} parent=5 // pred_check_branch
        %690 = sbr.rel (%p688) target = $region72
      $region71: #{attention_pallas.3} parent=5 // pred_region
        %s691 = ssub.s32 %s24, 2
        // Predicated region
        $region73: #{attention_pallas.3} parent=71 // pred_check
          %p692 = pneg %p224
        $region74: #{attention_pallas.3} parent=71 // pred_check_branch
          %694 = sbr.rel (%p692) target = $region76
        $region75: #{attention_pallas.3} parent=71 // pred_region
          %s695 = sand.u32 %s209, 1
          %s696 = scalar_lea.sflag [#allocation7], %s695
          %s697 = sand.u32 %s209, 1
          %s698 = smul.addr %s697, 2
          %s699 = scalar_lea.vmem [#allocation11], %s698
          %700 = dma.done %s696, 32
        $region76: #{attention_pallas.3} parent=71 // pred_fallthru
          _
      $region72: #{attention_pallas.3} parent=5 // pred_fallthru
        _
    $region6: #{attention_pallas.3} parent=1 // loop_footer
      %s28 = sadd.s32 1, %s24
    $region7: #{attention_pallas.3} parent=1 // loop_footer_branch
      %23 = sbr.rel target = $region3
    $region8: #{attention_pallas.3} parent=1 // loop_exit
      _
    %701 = vsyncpa [#allocation6], 1
    %s702 = scalar_lea.sflag [#allocation6], 1
    %703 = vsyncpa %s702, 1
    %704 = vsyncpa [#allocation9], 1
    %705 = vsyncpa [#allocation7], 1
    %s706 = scalar_lea.sflag [#allocation7], 1
    %707 = vsyncpa %s706, 1

</llo_original>
